<compile_context>
chip_gen: v5e
topology: v5e:2x2
jax: 0.10.0
libtpu: 0.0.40
codegen_flags: <defaults>
</compile_context>

<pallas_src>
import functools
import math

import jax
import jax.numpy as jnp
from jax.experimental import pallas as pl
from jax.experimental.pallas import tpu as pltpu


def _layernorm(x, gamma, beta, eps=1e-5):
    mu = jnp.mean(x, axis=-1, keepdims=True)
    var = jnp.mean((x - mu) ** 2, axis=-1, keepdims=True)
    return (x - mu) * jax.lax.rsqrt(var + eps) * gamma + beta


def _gelu_exact(x):
    # PyTorch nn.GELU() default = exact erf formulation.
    return 0.5 * x * (1.0 + jax.lax.erf(x * (1.0 / math.sqrt(2.0))))


def encode_block_kernel(
    x_ref,
    wq_ref, bq_ref, wk_ref, bk_ref, wv_ref, bv_ref, wo_ref, bo_ref,
    g0_ref, be0_ref,
    w0_ref, b0_ref, w1_ref, b1_ref,
    g1_ref, be1_ref,
    o_ref,
    *, num_heads,
):
    Bt, N, F = x_ref.shape
    dh = F // num_heads

    x = x_ref[...].astype(jnp.float32)               # (Bt, N, F), kept f32 for residual/LN
    x2 = x.reshape(Bt * N, F)                        # tall M for the MXU
    xb = x2.astype(jnp.bfloat16)

    def proj(a_bf16, w_ref, b_ref):
        # Weights are pre-transposed to (in, out) and stored bf16 -> no in-kernel .T.
        y = jax.lax.dot_general(
            a_bf16, w_ref[...],
            dimension_numbers=(((1,), (0,)), ((), ())),
            preferred_element_type=jnp.float32)
        return y + b_ref[...]

    # ---- multihead self-attention ----------------------------------------
    # 1/sqrt(dh) is already folded into wq/bq by the wrapper.
    q = proj(xb, wq_ref, bq_ref).reshape(Bt, N, F).astype(jnp.bfloat16)
    k = proj(xb, wk_ref, bk_ref).reshape(Bt, N, F).astype(jnp.bfloat16)
    v = proj(xb, wv_ref, bv_ref).reshape(Bt, N, F).astype(jnp.bfloat16)

    wo = wo_ref[...]                                 # (F, F) bf16, (in, out)
    attn = jnp.zeros((Bt * N, F), jnp.float32)
    for h in range(num_heads):
        sl = slice(h * dh, (h + 1) * dh)
        qh, kh, vh = q[:, :, sl], k[:, :, sl], v[:, :, sl]

        s = jnp.einsum('bqd,bkd->bqk', qh, kh,
                       preferred_element_type=jnp.float32)       # (Bt, N, N)
        m = jnp.max(s, axis=-1, keepdims=True)
        e = jnp.exp(s - m)
        p = (e * pl.reciprocal(jnp.sum(e, axis=-1, keepdims=True),
                               approx=True)).astype(jnp.bfloat16)
        ctx = jnp.einsum('bqk,bkd->bqd', p, vh,
                         preferred_element_type=jnp.float32)     # (Bt, N, dh)

        # Fold this head's slice of Wo straight into the accumulator
        # (removes the lane-axis concat of head outputs).
        attn += jax.lax.dot_general(
            ctx.reshape(Bt * N, dh).astype(jnp.bfloat16), wo[sl, :],
            dimension_numbers=(((1,), (0,)), ((), ())),
            preferred_element_type=jnp.float32)
    attn += bo_ref[...]

    # residual + layernorm0 (dropout = identity in eval)
    x2 = _layernorm(x2 + attn, g0_ref[...], be0_ref[...])

    # ---- pointwise "conv" FFN (Conv1d kernel_size=1 == feature matmul) ----
    h1 = _gelu_exact(proj(x2.astype(jnp.bfloat16), w0_ref, b0_ref))
    h1 = proj(h1.astype(jnp.bfloat16), w1_ref, b1_ref)

    # residual + layernorm1
    y = _layernorm(x2 + h1, g1_ref[...], be1_ref[...])
    o_ref[...] = y.reshape(Bt, N, F).astype(o_ref.dtype)


def _pick_block_b(B, N):
    """Block several batch elements per grid step so block_b*N rows feed the MXU,
    while keeping >=2 grid steps when possible (so both v7x TensorCores get work)."""
    divisors = [d for d in range(1, B + 1) if B % d == 0]
    for d in divisors:
        if d * N >= 256 and (B // d) >= 2:
            return d
    for d in divisors:
        if d * N >= 256:
            return d
    cands = [d for d in divisors if (B // d) >= 2]
    return max(cands) if cands else B


def encode_block_forward(x, params, num_heads, *, block_b=None):
    B, N, F = x.shape
    assert F % num_heads == 0
    dh = F // num_heads
    scale = 1.0 / math.sqrt(dh)

    if block_b is None:
        block_b = _pick_block_b(B, N)
    assert B % block_b == 0

    def w_t(name, s=1.0):
        # PyTorch Linear / Conv1d(k=1) weight is (out, in); store (in, out) bf16.
        return (params[name].astype(jnp.float32).T * s).astype(jnp.bfloat16)

    def vec(name, s=1.0):
        return (params[name].astype(jnp.float32).reshape(1, F) * s)

    mats = [
        w_t("wq", scale), vec("bq", scale),        # scale folded into q projection
        w_t("wk"), vec("bk"),
        w_t("wv"), vec("bv"),
        w_t("wo"), vec("bo"),
        vec("g0"), vec("be0"),
        w_t("w0"), vec("b0"),
        w_t("w1"), vec("b1"),
        vec("g1"), vec("be1"),
    ]

    def const_spec(p):
        nd = p.ndim
        return pl.BlockSpec(p.shape, lambda b, _nd=nd: (0,) * _nd)

    in_specs = [pl.BlockSpec((block_b, N, F), lambda b: (b, 0, 0))]
    in_specs += [const_spec(p) for p in mats]

    return pl.pallas_call(
        functools.partial(encode_block_kernel, num_heads=num_heads),
        out_shape=jax.ShapeDtypeStruct((B, N, F), x.dtype),
        grid_spec=pltpu.PrefetchScalarGridSpec(
            num_scalar_prefetch=0,
            grid=(B // block_b,),
            in_specs=in_specs,
            out_specs=pl.BlockSpec((block_b, N, F), lambda b: (b, 0, 0)),
        ),
        compiler_params=pltpu.CompilerParams(
            dimension_semantics=("parallel",),
            vmem_limit_bytes=32 * 1024 * 1024,
        ),
    )(x, *mats)


# ---------------------------------------------------------------------------
# Pure-JAX reference (f32 math, weights rounded to bf16 to match the kernel's
# bf16 weight storage; activation-cast differences are covered by tolerance).
# ---------------------------------------------------------------------------
def encode_block_reference(x, p, num_heads):
    B, N, F = x.shape
    dh = F // num_heads

    def bf(w):
        return w.astype(jnp.bfloat16).astype(jnp.float32)

    def lin(z, w, b):
        return z @ bf(w).T + b.reshape(1, F)

    q = lin(x, p["wq"], p["bq"]).reshape(B, N, num_heads, dh).transpose(0, 2, 1, 3)
    k = lin(x, p["wk"], p["bk"]).reshape(B, N, num_heads, dh).transpose(0, 2, 1, 3)
    v = lin(x, p["wv"], p["bv"]).reshape(B, N, num_heads, dh).transpose(0, 2, 1, 3)
    s = jnp.einsum("bhqd,bhkd->bhqk", q, k) / math.sqrt(dh)
    a = jax.nn.softmax(s, axis=-1)
    o = jnp.einsum("bhqk,bhkd->bhqd", a, v).transpose(0, 2, 1, 3).reshape(B, N, F)
    o = lin(o, p["wo"], p["bo"])

    def ln(z, g, b, eps=1e-5):
        mu = jnp.mean(z, -1, keepdims=True)
        var = jnp.mean((z - mu) ** 2, -1, keepdims=True)
        return (z - mu) / jnp.sqrt(var + eps) * g.reshape(1, F) + b.reshape(1, F)

    x = ln(x + o, p["g0"], p["be0"])
    h = lin(x, p["w0"], p["b0"])
    h = 0.5 * h * (1.0 + jax.lax.erf(h / math.sqrt(2.0)))
    h = lin(h, p["w1"], p["b1"])
    return ln(x + h, p["g1"], p["be1"])


if __name__ == "__main__":
    B, N, F, H = 4, 8, 128, 4   # F lane-dense (multiple of 128)

    key = jax.random.PRNGKey(0)
    ks = jax.random.split(key, 13)

    def init_w(k, shape, fan_in):
        bound = 1.0 / math.sqrt(fan_in)
        return jax.random.uniform(k, shape, jnp.float32, -bound, bound)

    params = {
        # attention projections (Linear: weight (out, in), bias (out,))
        "wq": init_w(ks[0], (F, F), F), "bq": init_w(ks[1], (F,), F),
        "wk": init_w(ks[2], (F, F), F), "bk": init_w(ks[3], (F,), F),
        "wv": init_w(ks[4], (F, F), F), "bv": init_w(ks[5], (F,), F),
        "wo": init_w(ks[6], (F, F), F), "bo": init_w(ks[7], (F,), F),
        # layernorm 0
        "g0": jnp.ones((F,), jnp.float32), "be0": jnp.zeros((F,), jnp.float32),
        # conv1d0 / conv1d1 (kernel_size=1 -> squeezed to (out, in))
        "w0": init_w(ks[8], (F, F), F), "b0": init_w(ks[9], (F,), F),
        "w1": init_w(ks[10], (F, F), F), "b1": init_w(ks[11], (F,), F),
        # layernorm 1
        "g1": jnp.ones((F,), jnp.float32), "be1": jnp.zeros((F,), jnp.float32),
    }

    x = jax.random.normal(ks[12], (B, N, F), jnp.float32)

    out = jax.block_until_ready(encode_block_forward(x, params, num_heads=H))
    ref = encode_block_reference(x, params, num_heads=H)

    assert out.shape == (B, N, F)
    assert jnp.allclose(out, ref, rtol=3e-2, atol=3e-2), "mismatch vs JAX reference"

    print("KERNEL_OK")
</pallas_src>

<mosaic_0001>
module attributes {stable_mosaic.version = 11 : i64} {
  func.func @encode_block_kernel(%arg0: i32, %arg1: memref<2x8x128xf32, #tpu.memory_space<vmem>>, %arg2: memref<128x128xbf16, #tpu.memory_space<vmem>>, %arg3: memref<1x128xf32, #tpu.memory_space<vmem>>, %arg4: memref<128x128xbf16, #tpu.memory_space<vmem>>, %arg5: memref<1x128xf32, #tpu.memory_space<vmem>>, %arg6: memref<128x128xbf16, #tpu.memory_space<vmem>>, %arg7: memref<1x128xf32, #tpu.memory_space<vmem>>, %arg8: memref<128x128xbf16, #tpu.memory_space<vmem>>, %arg9: memref<1x128xf32, #tpu.memory_space<vmem>>, %arg10: memref<1x128xf32, #tpu.memory_space<vmem>>, %arg11: memref<1x128xf32, #tpu.memory_space<vmem>>, %arg12: memref<128x128xbf16, #tpu.memory_space<vmem>>, %arg13: memref<1x128xf32, #tpu.memory_space<vmem>>, %arg14: memref<128x128xbf16, #tpu.memory_space<vmem>>, %arg15: memref<1x128xf32, #tpu.memory_space<vmem>>, %arg16: memref<1x128xf32, #tpu.memory_space<vmem>>, %arg17: memref<1x128xf32, #tpu.memory_space<vmem>>, %arg18: memref<2x8x128xf32, #tpu.memory_space<vmem>>) attributes {dimension_semantics = [#tpu.dimension_semantics<parallel>], iteration_bounds = array<i64: 2>, scalar_prefetch = 0 : i64, scratch_operands = 0 : i64, tpu.core_type = #tpu.core_type<tc>, window_params = [{transform_indices = @transform_0, window_bounds = array<i64: 2, 8, 128>}, {pipeline_mode = #tpu.pipeline_mode<synchronous>, transform_indices = @transform_1, window_bounds = array<i64: 128, 128>}, {pipeline_mode = #tpu.pipeline_mode<synchronous>, transform_indices = @transform_2, window_bounds = array<i64: 1, 128>}, {pipeline_mode = #tpu.pipeline_mode<synchronous>, transform_indices = @transform_3, window_bounds = array<i64: 128, 128>}, {pipeline_mode = #tpu.pipeline_mode<synchronous>, transform_indices = @transform_4, window_bounds = array<i64: 1, 128>}, {pipeline_mode = #tpu.pipeline_mode<synchronous>, transform_indices = @transform_5, window_bounds = array<i64: 128, 128>}, {pipeline_mode = #tpu.pipeline_mode<synchronous>, transform_indices = @transform_6, window_bounds = array<i64: 1, 128>}, {pipeline_mode = #tpu.pipeline_mode<synchronous>, transform_indices = @transform_7, window_bounds = array<i64: 128, 128>}, {pipeline_mode = #tpu.pipeline_mode<synchronous>, transform_indices = @transform_8, window_bounds = array<i64: 1, 128>}, {pipeline_mode = #tpu.pipeline_mode<synchronous>, transform_indices = @transform_9, window_bounds = array<i64: 1, 128>}, {pipeline_mode = #tpu.pipeline_mode<synchronous>, transform_indices = @transform_10, window_bounds = array<i64: 1, 128>}, {pipeline_mode = #tpu.pipeline_mode<synchronous>, transform_indices = @transform_11, window_bounds = array<i64: 128, 128>}, {pipeline_mode = #tpu.pipeline_mode<synchronous>, transform_indices = @transform_12, window_bounds = array<i64: 1, 128>}, {pipeline_mode = #tpu.pipeline_mode<synchronous>, transform_indices = @transform_13, window_bounds = array<i64: 128, 128>}, {pipeline_mode = #tpu.pipeline_mode<synchronous>, transform_indices = @transform_14, window_bounds = array<i64: 1, 128>}, {pipeline_mode = #tpu.pipeline_mode<synchronous>, transform_indices = @transform_15, window_bounds = array<i64: 1, 128>}, {pipeline_mode = #tpu.pipeline_mode<synchronous>, transform_indices = @transform_16, window_bounds = array<i64: 1, 128>}, {transform_indices = @transform_17, window_bounds = array<i64: 2, 8, 128>}]} {
    %c0 = arith.constant 0 : index
    %c0_0 = arith.constant 0 : index
    %c0_1 = arith.constant 0 : index
    %0 = vector.load %arg1[%c0, %c0_0, %c0_1] : memref<2x8x128xf32, #tpu.memory_space<vmem>>, vector<2x8x128xf32>
    %1 = vector.shape_cast %0 : vector<2x8x128xf32> to vector<16x128xf32>
    %2 = arith.truncf %1 : vector<16x128xf32> to vector<16x128xbf16>
    %c0_2 = arith.constant 0 : index
    %c0_3 = arith.constant 0 : index
    %3 = vector.load %arg2[%c0_2, %c0_3] : memref<128x128xbf16, #tpu.memory_space<vmem>>, vector<128x128xbf16>
    %cst = arith.constant dense<0.000000e+00> : vector<16x128xf32>
    %4 = tpu.matmul %2, %3, %cst {dimension_numbers = #tpu.dot_dimension_numbers<[1], [0], [0], [1], [0, 0, 1, 1], [], []>} : vector<16x128xbf16>, vector<128x128xbf16>, vector<16x128xf32> -> vector<16x128xf32>
    %c0_4 = arith.constant 0 : index
    %c0_5 = arith.constant 0 : index
    %5 = vector.load %arg3[%c0_4, %c0_5] : memref<1x128xf32, #tpu.memory_space<vmem>>, vector<1x128xf32>
    %6 = vector.broadcast %5 : vector<1x128xf32> to vector<16x128xf32>
    %7 = arith.addf %4, %6 : vector<16x128xf32>
    %8 = vector.shape_cast %7 : vector<16x128xf32> to vector<2x8x128xf32>
    %9 = arith.truncf %8 : vector<2x8x128xf32> to vector<2x8x128xbf16>
    %c0_6 = arith.constant 0 : index
    %c0_7 = arith.constant 0 : index
    %10 = vector.load %arg4[%c0_6, %c0_7] : memref<128x128xbf16, #tpu.memory_space<vmem>>, vector<128x128xbf16>
    %cst_8 = arith.constant dense<0.000000e+00> : vector<16x128xf32>
    %11 = tpu.matmul %2, %10, %cst_8 {dimension_numbers = #tpu.dot_dimension_numbers<[1], [0], [0], [1], [0, 0, 1, 1], [], []>} : vector<16x128xbf16>, vector<128x128xbf16>, vector<16x128xf32> -> vector<16x128xf32>
    %c0_9 = arith.constant 0 : index
    %c0_10 = arith.constant 0 : index
    %12 = vector.load %arg5[%c0_9, %c0_10] : memref<1x128xf32, #tpu.memory_space<vmem>>, vector<1x128xf32>
    %13 = vector.broadcast %12 : vector<1x128xf32> to vector<16x128xf32>
    %14 = arith.addf %11, %13 : vector<16x128xf32>
    %15 = vector.shape_cast %14 : vector<16x128xf32> to vector<2x8x128xf32>
    %16 = arith.truncf %15 : vector<2x8x128xf32> to vector<2x8x128xbf16>
    %c0_11 = arith.constant 0 : index
    %c0_12 = arith.constant 0 : index
    %17 = vector.load %arg6[%c0_11, %c0_12] : memref<128x128xbf16, #tpu.memory_space<vmem>>, vector<128x128xbf16>
    %cst_13 = arith.constant dense<0.000000e+00> : vector<16x128xf32>
    %18 = tpu.matmul %2, %17, %cst_13 {dimension_numbers = #tpu.dot_dimension_numbers<[1], [0], [0], [1], [0, 0, 1, 1], [], []>} : vector<16x128xbf16>, vector<128x128xbf16>, vector<16x128xf32> -> vector<16x128xf32>
    %c0_14 = arith.constant 0 : index
    %c0_15 = arith.constant 0 : index
    %19 = vector.load %arg7[%c0_14, %c0_15] : memref<1x128xf32, #tpu.memory_space<vmem>>, vector<1x128xf32>
    %20 = vector.broadcast %19 : vector<1x128xf32> to vector<16x128xf32>
    %21 = arith.addf %18, %20 : vector<16x128xf32>
    %22 = vector.shape_cast %21 : vector<16x128xf32> to vector<2x8x128xf32>
    %23 = arith.truncf %22 : vector<2x8x128xf32> to vector<2x8x128xbf16>
    %c0_16 = arith.constant 0 : index
    %c0_17 = arith.constant 0 : index
    %24 = vector.load %arg8[%c0_16, %c0_17] : memref<128x128xbf16, #tpu.memory_space<vmem>>, vector<128x128xbf16>
    %cst_18 = arith.constant 0.000000e+00 : f32
    %25 = vector.broadcast %cst_18 : f32 to vector<16x128xf32>
    %26 = vector.extract_strided_slice %9 {offsets = [0, 0, 0], sizes = [2, 8, 32], strides = [1, 1, 1]} : vector<2x8x128xbf16> to vector<2x8x32xbf16>
    %27 = vector.extract_strided_slice %16 {offsets = [0, 0, 0], sizes = [2, 8, 32], strides = [1, 1, 1]} : vector<2x8x128xbf16> to vector<2x8x32xbf16>
    %28 = vector.extract_strided_slice %23 {offsets = [0, 0, 0], sizes = [2, 8, 32], strides = [1, 1, 1]} : vector<2x8x128xbf16> to vector<2x8x32xbf16>
    "tpu.trace_start"() <{level = 10 : i32, message = "bqd,bkd->bqk"}> : () -> ()
    %cst_19 = arith.constant dense<0.000000e+00> : vector<2x8x8xf32>
    %29 = tpu.matmul %26, %27, %cst_19 {dimension_numbers = #tpu.dot_dimension_numbers<[2], [2], [1], [1], [0, 0, 0, 1, 1, 1], [0], [0]>} : vector<2x8x32xbf16>, vector<2x8x32xbf16>, vector<2x8x8xf32> -> vector<2x8x8xf32>
    "tpu.trace_stop"() : () -> ()
    %cst_20 = arith.constant dense<0xFF800000> : vector<2x8xf32>
    %30 = vector.multi_reduction <maximumf>, %29, %cst_20 [2] : vector<2x8x8xf32> to vector<2x8xf32>
    %31 = vector.shape_cast %30 : vector<2x8xf32> to vector<2x8x1xf32>
    %32 = vector.broadcast %31 : vector<2x8x1xf32> to vector<2x8x8xf32>
    %33 = arith.subf %29, %32 : vector<2x8x8xf32>
    %34 = math.exp %33 : vector<2x8x8xf32>
    %cst_21 = arith.constant dense<0.000000e+00> : vector<2x8xf32>
    %35 = vector.multi_reduction <add>, %34, %cst_21 [2] : vector<2x8x8xf32> to vector<2x8xf32>
    %36 = vector.shape_cast %35 : vector<2x8xf32> to vector<2x8x1xf32>
    %37 = tpu.reciprocal %36 {approx = true} : vector<2x8x1xf32> -> vector<2x8x1xf32>
    %38 = vector.broadcast %37 : vector<2x8x1xf32> to vector<2x8x8xf32>
    %39 = arith.mulf %34, %38 : vector<2x8x8xf32>
    %40 = arith.truncf %39 : vector<2x8x8xf32> to vector<2x8x8xbf16>
    "tpu.trace_start"() <{level = 10 : i32, message = "bqk,bkd->bqd"}> : () -> ()
    %cst_22 = arith.constant dense<0.000000e+00> : vector<2x8x32xf32>
    %41 = tpu.matmul %40, %28, %cst_22 {dimension_numbers = #tpu.dot_dimension_numbers<[2], [1], [1], [2], [0, 0, 0, 1, 1, 2], [0], [0]>} : vector<2x8x8xbf16>, vector<2x8x32xbf16>, vector<2x8x32xf32> -> vector<2x8x32xf32>
    "tpu.trace_stop"() : () -> ()
    %42 = vector.shape_cast %41 : vector<2x8x32xf32> to vector<16x32xf32>
    %43 = arith.truncf %42 : vector<16x32xf32> to vector<16x32xbf16>
    %44 = vector.extract_strided_slice %24 {offsets = [0, 0], sizes = [32, 128], strides = [1, 1]} : vector<128x128xbf16> to vector<32x128xbf16>
    %cst_23 = arith.constant dense<0.000000e+00> : vector<16x128xf32>
    %45 = tpu.matmul %43, %44, %cst_23 {dimension_numbers = #tpu.dot_dimension_numbers<[1], [0], [0], [1], [0, 0, 1, 1], [], []>} : vector<16x32xbf16>, vector<32x128xbf16>, vector<16x128xf32> -> vector<16x128xf32>
    %46 = arith.addf %25, %45 : vector<16x128xf32>
    %47 = vector.extract_strided_slice %9 {offsets = [0, 0, 32], sizes = [2, 8, 32], strides = [1, 1, 1]} : vector<2x8x128xbf16> to vector<2x8x32xbf16>
    %48 = vector.extract_strided_slice %16 {offsets = [0, 0, 32], sizes = [2, 8, 32], strides = [1, 1, 1]} : vector<2x8x128xbf16> to vector<2x8x32xbf16>
    %49 = vector.extract_strided_slice %23 {offsets = [0, 0, 32], sizes = [2, 8, 32], strides = [1, 1, 1]} : vector<2x8x128xbf16> to vector<2x8x32xbf16>
    "tpu.trace_start"() <{level = 10 : i32, message = "bqd,bkd->bqk"}> : () -> ()
    %cst_24 = arith.constant dense<0.000000e+00> : vector<2x8x8xf32>
    %50 = tpu.matmul %47, %48, %cst_24 {dimension_numbers = #tpu.dot_dimension_numbers<[2], [2], [1], [1], [0, 0, 0, 1, 1, 1], [0], [0]>} : vector<2x8x32xbf16>, vector<2x8x32xbf16>, vector<2x8x8xf32> -> vector<2x8x8xf32>
    "tpu.trace_stop"() : () -> ()
    %cst_25 = arith.constant dense<0xFF800000> : vector<2x8xf32>
    %51 = vector.multi_reduction <maximumf>, %50, %cst_25 [2] : vector<2x8x8xf32> to vector<2x8xf32>
    %52 = vector.shape_cast %51 : vector<2x8xf32> to vector<2x8x1xf32>
    %53 = vector.broadcast %52 : vector<2x8x1xf32> to vector<2x8x8xf32>
    %54 = arith.subf %50, %53 : vector<2x8x8xf32>
    %55 = math.exp %54 : vector<2x8x8xf32>
    %cst_26 = arith.constant dense<0.000000e+00> : vector<2x8xf32>
    %56 = vector.multi_reduction <add>, %55, %cst_26 [2] : vector<2x8x8xf32> to vector<2x8xf32>
    %57 = vector.shape_cast %56 : vector<2x8xf32> to vector<2x8x1xf32>
    %58 = tpu.reciprocal %57 {approx = true} : vector<2x8x1xf32> -> vector<2x8x1xf32>
    %59 = vector.broadcast %58 : vector<2x8x1xf32> to vector<2x8x8xf32>
    %60 = arith.mulf %55, %59 : vector<2x8x8xf32>
    %61 = arith.truncf %60 : vector<2x8x8xf32> to vector<2x8x8xbf16>
    "tpu.trace_start"() <{level = 10 : i32, message = "bqk,bkd->bqd"}> : () -> ()
    %cst_27 = arith.constant dense<0.000000e+00> : vector<2x8x32xf32>
    %62 = tpu.matmul %61, %49, %cst_27 {dimension_numbers = #tpu.dot_dimension_numbers<[2], [1], [1], [2], [0, 0, 0, 1, 1, 2], [0], [0]>} : vector<2x8x8xbf16>, vector<2x8x32xbf16>, vector<2x8x32xf32> -> vector<2x8x32xf32>
    "tpu.trace_stop"() : () -> ()
    %63 = vector.shape_cast %62 : vector<2x8x32xf32> to vector<16x32xf32>
    %64 = arith.truncf %63 : vector<16x32xf32> to vector<16x32xbf16>
    %65 = vector.extract_strided_slice %24 {offsets = [32, 0], sizes = [32, 128], strides = [1, 1]} : vector<128x128xbf16> to vector<32x128xbf16>
    %cst_28 = arith.constant dense<0.000000e+00> : vector<16x128xf32>
    %66 = tpu.matmul %64, %65, %cst_28 {dimension_numbers = #tpu.dot_dimension_numbers<[1], [0], [0], [1], [0, 0, 1, 1], [], []>} : vector<16x32xbf16>, vector<32x128xbf16>, vector<16x128xf32> -> vector<16x128xf32>
    %67 = arith.addf %46, %66 : vector<16x128xf32>
    %68 = vector.extract_strided_slice %9 {offsets = [0, 0, 64], sizes = [2, 8, 32], strides = [1, 1, 1]} : vector<2x8x128xbf16> to vector<2x8x32xbf16>
    %69 = vector.extract_strided_slice %16 {offsets = [0, 0, 64], sizes = [2, 8, 32], strides = [1, 1, 1]} : vector<2x8x128xbf16> to vector<2x8x32xbf16>
    %70 = vector.extract_strided_slice %23 {offsets = [0, 0, 64], sizes = [2, 8, 32], strides = [1, 1, 1]} : vector<2x8x128xbf16> to vector<2x8x32xbf16>
    "tpu.trace_start"() <{level = 10 : i32, message = "bqd,bkd->bqk"}> : () -> ()
    %cst_29 = arith.constant dense<0.000000e+00> : vector<2x8x8xf32>
    %71 = tpu.matmul %68, %69, %cst_29 {dimension_numbers = #tpu.dot_dimension_numbers<[2], [2], [1], [1], [0, 0, 0, 1, 1, 1], [0], [0]>} : vector<2x8x32xbf16>, vector<2x8x32xbf16>, vector<2x8x8xf32> -> vector<2x8x8xf32>
    "tpu.trace_stop"() : () -> ()
    %cst_30 = arith.constant dense<0xFF800000> : vector<2x8xf32>
    %72 = vector.multi_reduction <maximumf>, %71, %cst_30 [2] : vector<2x8x8xf32> to vector<2x8xf32>
    %73 = vector.shape_cast %72 : vector<2x8xf32> to vector<2x8x1xf32>
    %74 = vector.broadcast %73 : vector<2x8x1xf32> to vector<2x8x8xf32>
    %75 = arith.subf %71, %74 : vector<2x8x8xf32>
    %76 = math.exp %75 : vector<2x8x8xf32>
    %cst_31 = arith.constant dense<0.000000e+00> : vector<2x8xf32>
    %77 = vector.multi_reduction <add>, %76, %cst_31 [2] : vector<2x8x8xf32> to vector<2x8xf32>
    %78 = vector.shape_cast %77 : vector<2x8xf32> to vector<2x8x1xf32>
    %79 = tpu.reciprocal %78 {approx = true} : vector<2x8x1xf32> -> vector<2x8x1xf32>
    %80 = vector.broadcast %79 : vector<2x8x1xf32> to vector<2x8x8xf32>
    %81 = arith.mulf %76, %80 : vector<2x8x8xf32>
    %82 = arith.truncf %81 : vector<2x8x8xf32> to vector<2x8x8xbf16>
    "tpu.trace_start"() <{level = 10 : i32, message = "bqk,bkd->bqd"}> : () -> ()
    %cst_32 = arith.constant dense<0.000000e+00> : vector<2x8x32xf32>
    %83 = tpu.matmul %82, %70, %cst_32 {dimension_numbers = #tpu.dot_dimension_numbers<[2], [1], [1], [2], [0, 0, 0, 1, 1, 2], [0], [0]>} : vector<2x8x8xbf16>, vector<2x8x32xbf16>, vector<2x8x32xf32> -> vector<2x8x32xf32>
    "tpu.trace_stop"() : () -> ()
    %84 = vector.shape_cast %83 : vector<2x8x32xf32> to vector<16x32xf32>
    %85 = arith.truncf %84 : vector<16x32xf32> to vector<16x32xbf16>
    %86 = vector.extract_strided_slice %24 {offsets = [64, 0], sizes = [32, 128], strides = [1, 1]} : vector<128x128xbf16> to vector<32x128xbf16>
    %cst_33 = arith.constant dense<0.000000e+00> : vector<16x128xf32>
    %87 = tpu.matmul %85, %86, %cst_33 {dimension_numbers = #tpu.dot_dimension_numbers<[1], [0], [0], [1], [0, 0, 1, 1], [], []>} : vector<16x32xbf16>, vector<32x128xbf16>, vector<16x128xf32> -> vector<16x128xf32>
    %88 = arith.addf %67, %87 : vector<16x128xf32>
    %89 = vector.extract_strided_slice %9 {offsets = [0, 0, 96], sizes = [2, 8, 32], strides = [1, 1, 1]} : vector<2x8x128xbf16> to vector<2x8x32xbf16>
    %90 = vector.extract_strided_slice %16 {offsets = [0, 0, 96], sizes = [2, 8, 32], strides = [1, 1, 1]} : vector<2x8x128xbf16> to vector<2x8x32xbf16>
    %91 = vector.extract_strided_slice %23 {offsets = [0, 0, 96], sizes = [2, 8, 32], strides = [1, 1, 1]} : vector<2x8x128xbf16> to vector<2x8x32xbf16>
    "tpu.trace_start"() <{level = 10 : i32, message = "bqd,bkd->bqk"}> : () -> ()
    %cst_34 = arith.constant dense<0.000000e+00> : vector<2x8x8xf32>
    %92 = tpu.matmul %89, %90, %cst_34 {dimension_numbers = #tpu.dot_dimension_numbers<[2], [2], [1], [1], [0, 0, 0, 1, 1, 1], [0], [0]>} : vector<2x8x32xbf16>, vector<2x8x32xbf16>, vector<2x8x8xf32> -> vector<2x8x8xf32>
    "tpu.trace_stop"() : () -> ()
    %cst_35 = arith.constant dense<0xFF800000> : vector<2x8xf32>
    %93 = vector.multi_reduction <maximumf>, %92, %cst_35 [2] : vector<2x8x8xf32> to vector<2x8xf32>
    %94 = vector.shape_cast %93 : vector<2x8xf32> to vector<2x8x1xf32>
    %95 = vector.broadcast %94 : vector<2x8x1xf32> to vector<2x8x8xf32>
    %96 = arith.subf %92, %95 : vector<2x8x8xf32>
    %97 = math.exp %96 : vector<2x8x8xf32>
    %cst_36 = arith.constant dense<0.000000e+00> : vector<2x8xf32>
    %98 = vector.multi_reduction <add>, %97, %cst_36 [2] : vector<2x8x8xf32> to vector<2x8xf32>
    %99 = vector.shape_cast %98 : vector<2x8xf32> to vector<2x8x1xf32>
    %100 = tpu.reciprocal %99 {approx = true} : vector<2x8x1xf32> -> vector<2x8x1xf32>
    %101 = vector.broadcast %100 : vector<2x8x1xf32> to vector<2x8x8xf32>
    %102 = arith.mulf %97, %101 : vector<2x8x8xf32>
    %103 = arith.truncf %102 : vector<2x8x8xf32> to vector<2x8x8xbf16>
    "tpu.trace_start"() <{level = 10 : i32, message = "bqk,bkd->bqd"}> : () -> ()
    %cst_37 = arith.constant dense<0.000000e+00> : vector<2x8x32xf32>
    %104 = tpu.matmul %103, %91, %cst_37 {dimension_numbers = #tpu.dot_dimension_numbers<[2], [1], [1], [2], [0, 0, 0, 1, 1, 2], [0], [0]>} : vector<2x8x8xbf16>, vector<2x8x32xbf16>, vector<2x8x32xf32> -> vector<2x8x32xf32>
    "tpu.trace_stop"() : () -> ()
    %105 = vector.shape_cast %104 : vector<2x8x32xf32> to vector<16x32xf32>
    %106 = arith.truncf %105 : vector<16x32xf32> to vector<16x32xbf16>
    %107 = vector.extract_strided_slice %24 {offsets = [96, 0], sizes = [32, 128], strides = [1, 1]} : vector<128x128xbf16> to vector<32x128xbf16>
    %cst_38 = arith.constant dense<0.000000e+00> : vector<16x128xf32>
    %108 = tpu.matmul %106, %107, %cst_38 {dimension_numbers = #tpu.dot_dimension_numbers<[1], [0], [0], [1], [0, 0, 1, 1], [], []>} : vector<16x32xbf16>, vector<32x128xbf16>, vector<16x128xf32> -> vector<16x128xf32>
    %109 = arith.addf %88, %108 : vector<16x128xf32>
    %c0_39 = arith.constant 0 : index
    %c0_40 = arith.constant 0 : index
    %110 = vector.load %arg9[%c0_39, %c0_40] : memref<1x128xf32, #tpu.memory_space<vmem>>, vector<1x128xf32>
    %111 = vector.broadcast %110 : vector<1x128xf32> to vector<16x128xf32>
    %112 = arith.addf %109, %111 : vector<16x128xf32>
    %113 = arith.addf %1, %112 : vector<16x128xf32>
    %c0_41 = arith.constant 0 : index
    %c0_42 = arith.constant 0 : index
    %114 = vector.load %arg10[%c0_41, %c0_42] : memref<1x128xf32, #tpu.memory_space<vmem>>, vector<1x128xf32>
    %c0_43 = arith.constant 0 : index
    %c0_44 = arith.constant 0 : index
    %115 = vector.load %arg11[%c0_43, %c0_44] : memref<1x128xf32, #tpu.memory_space<vmem>>, vector<1x128xf32>
    %cst_45 = arith.constant dense<0.000000e+00> : vector<16xf32>
    %116 = vector.multi_reduction <add>, %113, %cst_45 [1] : vector<16x128xf32> to vector<16xf32>
    %117 = vector.shape_cast %116 : vector<16xf32> to vector<16x1xf32>
    %cst_46 = arith.constant 1.280000e+02 : f32
    %118 = vector.broadcast %cst_46 : f32 to vector<16x1xf32>
    %119 = arith.divf %117, %118 : vector<16x1xf32>
    %120 = vector.broadcast %119 : vector<16x1xf32> to vector<16x128xf32>
    %121 = arith.subf %113, %120 : vector<16x128xf32>
    %122 = arith.mulf %121, %121 : vector<16x128xf32>
    %cst_47 = arith.constant dense<0.000000e+00> : vector<16xf32>
    %123 = vector.multi_reduction <add>, %122, %cst_47 [1] : vector<16x128xf32> to vector<16xf32>
    %124 = vector.shape_cast %123 : vector<16xf32> to vector<16x1xf32>
    %cst_48 = arith.constant 1.280000e+02 : f32
    %125 = vector.broadcast %cst_48 : f32 to vector<16x1xf32>
    %126 = arith.divf %124, %125 : vector<16x1xf32>
    %127 = vector.broadcast %119 : vector<16x1xf32> to vector<16x128xf32>
    %128 = arith.subf %113, %127 : vector<16x128xf32>
    %cst_49 = arith.constant 9.99999974E-6 : f32
    %129 = vector.broadcast %cst_49 : f32 to vector<16x1xf32>
    %130 = arith.addf %126, %129 : vector<16x1xf32>
    %131 = math.rsqrt %130 : vector<16x1xf32>
    %132 = vector.broadcast %131 : vector<16x1xf32> to vector<16x128xf32>
    %133 = arith.mulf %128, %132 : vector<16x128xf32>
    %134 = vector.broadcast %114 : vector<1x128xf32> to vector<16x128xf32>
    %135 = arith.mulf %133, %134 : vector<16x128xf32>
    %136 = vector.broadcast %115 : vector<1x128xf32> to vector<16x128xf32>
    %137 = arith.addf %135, %136 : vector<16x128xf32>
    %138 = arith.truncf %137 : vector<16x128xf32> to vector<16x128xbf16>
    %c0_50 = arith.constant 0 : index
    %c0_51 = arith.constant 0 : index
    %139 = vector.load %arg12[%c0_50, %c0_51] : memref<128x128xbf16, #tpu.memory_space<vmem>>, vector<128x128xbf16>
    %cst_52 = arith.constant dense<0.000000e+00> : vector<16x128xf32>
    %140 = tpu.matmul %138, %139, %cst_52 {dimension_numbers = #tpu.dot_dimension_numbers<[1], [0], [0], [1], [0, 0, 1, 1], [], []>} : vector<16x128xbf16>, vector<128x128xbf16>, vector<16x128xf32> -> vector<16x128xf32>
    %c0_53 = arith.constant 0 : index
    %c0_54 = arith.constant 0 : index
    %141 = vector.load %arg13[%c0_53, %c0_54] : memref<1x128xf32, #tpu.memory_space<vmem>>, vector<1x128xf32>
    %142 = vector.broadcast %141 : vector<1x128xf32> to vector<16x128xf32>
    %143 = arith.addf %140, %142 : vector<16x128xf32>
    %cst_55 = arith.constant 5.000000e-01 : f32
    %144 = vector.broadcast %cst_55 : f32 to vector<16x128xf32>
    %145 = arith.mulf %144, %143 : vector<16x128xf32>
    %cst_56 = arith.constant 0.707106769 : f32
    %146 = vector.broadcast %cst_56 : f32 to vector<16x128xf32>
    %147 = arith.mulf %143, %146 : vector<16x128xf32>
    %148 = math.erf %147 : vector<16x128xf32>
    %cst_57 = arith.constant 1.000000e+00 : f32
    %149 = vector.broadcast %cst_57 : f32 to vector<16x128xf32>
    %150 = arith.addf %149, %148 : vector<16x128xf32>
    %151 = arith.mulf %145, %150 : vector<16x128xf32>
    %152 = arith.truncf %151 : vector<16x128xf32> to vector<16x128xbf16>
    %c0_58 = arith.constant 0 : index
    %c0_59 = arith.constant 0 : index
    %153 = vector.load %arg14[%c0_58, %c0_59] : memref<128x128xbf16, #tpu.memory_space<vmem>>, vector<128x128xbf16>
    %cst_60 = arith.constant dense<0.000000e+00> : vector<16x128xf32>
    %154 = tpu.matmul %152, %153, %cst_60 {dimension_numbers = #tpu.dot_dimension_numbers<[1], [0], [0], [1], [0, 0, 1, 1], [], []>} : vector<16x128xbf16>, vector<128x128xbf16>, vector<16x128xf32> -> vector<16x128xf32>
    %c0_61 = arith.constant 0 : index
    %c0_62 = arith.constant 0 : index
    %155 = vector.load %arg15[%c0_61, %c0_62] : memref<1x128xf32, #tpu.memory_space<vmem>>, vector<1x128xf32>
    %156 = vector.broadcast %155 : vector<1x128xf32> to vector<16x128xf32>
    %157 = arith.addf %154, %156 : vector<16x128xf32>
    %158 = arith.addf %137, %157 : vector<16x128xf32>
    %c0_63 = arith.constant 0 : index
    %c0_64 = arith.constant 0 : index
    %159 = vector.load %arg16[%c0_63, %c0_64] : memref<1x128xf32, #tpu.memory_space<vmem>>, vector<1x128xf32>
    %c0_65 = arith.constant 0 : index
    %c0_66 = arith.constant 0 : index
    %160 = vector.load %arg17[%c0_65, %c0_66] : memref<1x128xf32, #tpu.memory_space<vmem>>, vector<1x128xf32>
    %cst_67 = arith.constant dense<0.000000e+00> : vector<16xf32>
    %161 = vector.multi_reduction <add>, %158, %cst_67 [1] : vector<16x128xf32> to vector<16xf32>
    %162 = vector.shape_cast %161 : vector<16xf32> to vector<16x1xf32>
    %cst_68 = arith.constant 1.280000e+02 : f32
    %163 = vector.broadcast %cst_68 : f32 to vector<16x1xf32>
    %164 = arith.divf %162, %163 : vector<16x1xf32>
    %165 = vector.broadcast %164 : vector<16x1xf32> to vector<16x128xf32>
    %166 = arith.subf %158, %165 : vector<16x128xf32>
    %167 = arith.mulf %166, %166 : vector<16x128xf32>
    %cst_69 = arith.constant dense<0.000000e+00> : vector<16xf32>
    %168 = vector.multi_reduction <add>, %167, %cst_69 [1] : vector<16x128xf32> to vector<16xf32>
    %169 = vector.shape_cast %168 : vector<16xf32> to vector<16x1xf32>
    %cst_70 = arith.constant 1.280000e+02 : f32
    %170 = vector.broadcast %cst_70 : f32 to vector<16x1xf32>
    %171 = arith.divf %169, %170 : vector<16x1xf32>
    %172 = vector.broadcast %164 : vector<16x1xf32> to vector<16x128xf32>
    %173 = arith.subf %158, %172 : vector<16x128xf32>
    %cst_71 = arith.constant 9.99999974E-6 : f32
    %174 = vector.broadcast %cst_71 : f32 to vector<16x1xf32>
    %175 = arith.addf %171, %174 : vector<16x1xf32>
    %176 = math.rsqrt %175 : vector<16x1xf32>
    %177 = vector.broadcast %176 : vector<16x1xf32> to vector<16x128xf32>
    %178 = arith.mulf %173, %177 : vector<16x128xf32>
    %179 = vector.broadcast %159 : vector<1x128xf32> to vector<16x128xf32>
    %180 = arith.mulf %178, %179 : vector<16x128xf32>
    %181 = vector.broadcast %160 : vector<1x128xf32> to vector<16x128xf32>
    %182 = arith.addf %180, %181 : vector<16x128xf32>
    %183 = vector.shape_cast %182 : vector<16x128xf32> to vector<2x8x128xf32>
    %c0_72 = arith.constant 0 : index
    %c0_73 = arith.constant 0 : index
    %c0_74 = arith.constant 0 : index
    %184 = vector.load %arg18[%c0_72, %c0_73, %c0_74] : memref<2x8x128xf32, #tpu.memory_space<vmem>>, vector<2x8x128xf32>
    tpu.vector_store %arg18[%c0_72, %c0_73, %c0_74], %183 {strides = array<i32>} : memref<2x8x128xf32, #tpu.memory_space<vmem>>, vector<2x8x128xf32>,
    return
  }
  func.func @transform_0(%arg0: i32) -> (i32, i32, i32) {
    %c0_i32 = arith.constant 0 : i32
    %c0_i32_0 = arith.constant 0 : i32
    %c0_i32_1 = arith.constant 0 : i32
    return %arg0, %c0_i32, %c0_i32_0 : i32, i32, i32
  }
  func.func @transform_1(%arg0: i32) -> (i32, i32) {
    %c0_i32 = arith.constant 0 : i32
    %c0_i32_0 = arith.constant 0 : i32
    %c0_i32_1 = arith.constant 0 : i32
    return %c0_i32, %c0_i32_0 : i32, i32
  }
  func.func @transform_2(%arg0: i32) -> (i32, i32) {
    %c0_i32 = arith.constant 0 : i32
    %c0_i32_0 = arith.constant 0 : i32
    %c0_i32_1 = arith.constant 0 : i32
    return %c0_i32, %c0_i32_0 : i32, i32
  }
  func.func @transform_3(%arg0: i32) -> (i32, i32) {
    %c0_i32 = arith.constant 0 : i32
    %c0_i32_0 = arith.constant 0 : i32
    %c0_i32_1 = arith.constant 0 : i32
    return %c0_i32, %c0_i32_0 : i32, i32
  }
  func.func @transform_4(%arg0: i32) -> (i32, i32) {
    %c0_i32 = arith.constant 0 : i32
    %c0_i32_0 = arith.constant 0 : i32
    %c0_i32_1 = arith.constant 0 : i32
    return %c0_i32, %c0_i32_0 : i32, i32
  }
  func.func @transform_5(%arg0: i32) -> (i32, i32) {
    %c0_i32 = arith.constant 0 : i32
    %c0_i32_0 = arith.constant 0 : i32
    %c0_i32_1 = arith.constant 0 : i32
    return %c0_i32, %c0_i32_0 : i32, i32
  }
  func.func @transform_6(%arg0: i32) -> (i32, i32) {
    %c0_i32 = arith.constant 0 : i32
    %c0_i32_0 = arith.constant 0 : i32
    %c0_i32_1 = arith.constant 0 : i32
    return %c0_i32, %c0_i32_0 : i32, i32
  }
  func.func @transform_7(%arg0: i32) -> (i32, i32) {
    %c0_i32 = arith.constant 0 : i32
    %c0_i32_0 = arith.constant 0 : i32
    %c0_i32_1 = arith.constant 0 : i32
    return %c0_i32, %c0_i32_0 : i32, i32
  }
  func.func @transform_8(%arg0: i32) -> (i32, i32) {
    %c0_i32 = arith.constant 0 : i32
    %c0_i32_0 = arith.constant 0 : i32
    %c0_i32_1 = arith.constant 0 : i32
    return %c0_i32, %c0_i32_0 : i32, i32
  }
  func.func @transform_9(%arg0: i32) -> (i32, i32) {
    %c0_i32 = arith.constant 0 : i32
    %c0_i32_0 = arith.constant 0 : i32
    %c0_i32_1 = arith.constant 0 : i32
    return %c0_i32, %c0_i32_0 : i32, i32
  }
  func.func @transform_10(%arg0: i32) -> (i32, i32) {
    %c0_i32 = arith.constant 0 : i32
    %c0_i32_0 = arith.constant 0 : i32
    %c0_i32_1 = arith.constant 0 : i32
    return %c0_i32, %c0_i32_0 : i32, i32
  }
  func.func @transform_11(%arg0: i32) -> (i32, i32) {
    %c0_i32 = arith.constant 0 : i32
    %c0_i32_0 = arith.constant 0 : i32
    %c0_i32_1 = arith.constant 0 : i32
    return %c0_i32, %c0_i32_0 : i32, i32
  }
  func.func @transform_12(%arg0: i32) -> (i32, i32) {
    %c0_i32 = arith.constant 0 : i32
    %c0_i32_0 = arith.constant 0 : i32
    %c0_i32_1 = arith.constant 0 : i32
    return %c0_i32, %c0_i32_0 : i32, i32
  }
  func.func @transform_13(%arg0: i32) -> (i32, i32) {
    %c0_i32 = arith.constant 0 : i32
    %c0_i32_0 = arith.constant 0 : i32
    %c0_i32_1 = arith.constant 0 : i32
    return %c0_i32, %c0_i32_0 : i32, i32
  }
  func.func @transform_14(%arg0: i32) -> (i32, i32) {
    %c0_i32 = arith.constant 0 : i32
    %c0_i32_0 = arith.constant 0 : i32
    %c0_i32_1 = arith.constant 0 : i32
    return %c0_i32, %c0_i32_0 : i32, i32
  }
  func.func @transform_15(%arg0: i32) -> (i32, i32) {
    %c0_i32 = arith.constant 0 : i32
    %c0_i32_0 = arith.constant 0 : i32
    %c0_i32_1 = arith.constant 0 : i32
    return %c0_i32, %c0_i32_0 : i32, i32
  }
  func.func @transform_16(%arg0: i32) -> (i32, i32) {
    %c0_i32 = arith.constant 0 : i32
    %c0_i32_0 = arith.constant 0 : i32
    %c0_i32_1 = arith.constant 0 : i32
    return %c0_i32, %c0_i32_0 : i32, i32
  }
  func.func @transform_17(%arg0: i32) -> (i32, i32, i32) {
    %c0_i32 = arith.constant 0 : i32
    %c0_i32_0 = arith.constant 0 : i32
    %c0_i32_1 = arith.constant 0 : i32
    return %arg0, %c0_i32, %c0_i32_0 : i32, i32, i32
  }
}

</mosaic_0001>

<llo_original>
// kernel: tpu_custom_call.1
$region0: #{tpu_custom_call.1}
  #allocation0 [shape = 'u32[]', space=smem, size = 0x4, offset = 0x4, fixed_abs, tag = 'smem constant byte address 0x4 - core index']
  #allocation1 [shape = 'u32[72,128]{1,0:T(1,128)}', space=vmem, size = 0x9000, scoped, tag = 'internal scratch']
  %s0 = inlined_call_operand.hbm [shape: f32[4,8,128], index: 0, kind: input, shape index: {}]
  %s1 = inlined_call_operand.hbm [shape: bf16[128,128], index: 1, kind: input, shape index: {}]
  %s2 = inlined_call_operand.vmem [shape: f32[1,128], index: 2, kind: input, shape index: {}]
  %s3 = inlined_call_operand.hbm [shape: bf16[128,128], index: 3, kind: input, shape index: {}]
  %s4 = inlined_call_operand.vmem [shape: f32[1,128], index: 4, kind: input, shape index: {}]
  %s5 = inlined_call_operand.hbm [shape: bf16[128,128], index: 5, kind: input, shape index: {}]
  %s6 = inlined_call_operand.vmem [shape: f32[1,128], index: 6, kind: input, shape index: {}]
  %s7 = inlined_call_operand.hbm [shape: bf16[128,128], index: 7, kind: input, shape index: {}]
  %s8 = inlined_call_operand.vmem [shape: f32[1,128], index: 8, kind: input, shape index: {}]
  %s9 = inlined_call_operand.vmem [shape: f32[1,128], index: 9, kind: input, shape index: {}]
  %s10 = inlined_call_operand.vmem [shape: f32[1,128], index: 10, kind: input, shape index: {}]
  %s11 = inlined_call_operand.hbm [shape: bf16[128,128], index: 11, kind: input, shape index: {}]
  %s12 = inlined_call_operand.vmem [shape: f32[1,128], index: 12, kind: input, shape index: {}]
  %s13 = inlined_call_operand.hbm [shape: bf16[128,128], index: 13, kind: input, shape index: {}]
  %s14 = inlined_call_operand.vmem [shape: f32[1,128], index: 14, kind: input, shape index: {}]
  %s15 = inlined_call_operand.vmem [shape: f32[1,128], index: 15, kind: input, shape index: {}]
  %s16 = inlined_call_operand.vmem [shape: f32[1,128], index: 16, kind: input, shape index: {}]
  %s17 = inlined_call_operand.hbm [shape: f32[4,8,128], index: 17, kind: output, shape index: {}]
  %s18 = sld [smem:[#allocation0]]
  $region129: #{tpu_custom_call.1} parent=0
    _
  %s20 = ssub.s32 1, %s18
  %s21 = scalar_select 0, %s20, %s18
  $region1: #{tpu_custom_call.1} parent=0
    #allocation2 [shape = 'u8[16384]{0}', space=vmem, size = 0x4000, scoped, tag = 'input window, operand 0']
    #allocation3 [shape = 's32[2]{0}', space=sflag, size = 0x8, scoped, tag = 'scoped memory for tpu_custom_call.1']
    #allocation4 [shape = 's32[2]{0}', space=sflag, size = 0x8, scoped, tag = 'scoped memory for tpu_custom_call.1']
    #allocation5 [shape = 'u8[32768]{0}', space=vmem, size = 0x8000, scoped, tag = 'input window, operand 1, single buffered']
    #allocation6 [shape = 's32[1]{0}', space=sflag, size = 0x4, scoped, tag = 'scoped memory for tpu_custom_call.1']
    #allocation7 [shape = 'u8[32768]{0}', space=vmem, size = 0x8000, scoped, tag = 'input window, operand 3, single buffered']
    #allocation8 [shape = 'u8[32768]{0}', space=vmem, size = 0x8000, scoped, tag = 'input window, operand 5, single buffered']
    #allocation9 [shape = 's32[1]{0}', space=sflag, size = 0x4, scoped, tag = 'scoped memory for tpu_custom_call.1']
    #allocation10 [shape = 'u8[32768]{0}', space=vmem, size = 0x8000, scoped, tag = 'input window, operand 7, single buffered']
    #allocation11 [shape = 'u8[32768]{0}', space=vmem, size = 0x8000, scoped, tag = 'input window, operand 11, single buffered']
    #allocation12 [shape = 's32[1]{0}', space=sflag, size = 0x4, scoped, tag = 'scoped memory for tpu_custom_call.1']
    #allocation13 [shape = 'u8[32768]{0}', space=vmem, size = 0x8000, scoped, tag = 'input window, operand 13, single buffered']
    #allocation14 [shape = 'u8[16384]{0}', space=vmem, size = 0x4000, scoped, tag = 'output window, operand 0']
    %22 = vsyncpa [#allocation3], 0
    %s23 = scalar_lea.sflag [#allocation3], 1
    %24 = vsyncpa %s23, 0
    %25 = vsyncpa [#allocation6], 0
    %26 = vsyncpa [#allocation9], 0
    %27 = vsyncpa [#allocation12], 0
    %28 = vsyncpa [#allocation4], 0
    %s29 = scalar_lea.sflag [#allocation4], 1
    %30 = vsyncpa %s29, 0
    loop: start=0, step=1, limit=4
    $region2: #{tpu_custom_call.1} parent=1 // loop_pre_header
      _
    $region3: #{tpu_custom_call.1} parent=1 // loop_header
      %s32 = sphi 0, %s36
      %p33 = scmp.ge.s32.totalorder %s32, 4
      %s42 = sphi 0, %s44
      %s45 = sphi 0, %s42
      %s46 = sphi 0, %s45
      %s62 = sphi 0, %s46
      %s66 = sphi 0, %s66
      %s68 = sphi 0, %s66
      %s69 = sphi 0, %s68
      %s83 = sphi 0, %s69
      %s87 = sphi 0, %s87
      %s89 = sphi 0, %s87
      %s90 = sphi 0, %s89
      %s104 = sphi 0, %s90
      %s108 = sphi 0, %s108
      %s110 = sphi 0, %s108
      %s111 = sphi 0, %s110
      %s125 = sphi 0, %s111
      %s129 = sphi 0, %s129
      %s131 = sphi 0, %s129
      %s132 = sphi 0, %s131
      %s146 = sphi 0, %s132
      %s150 = sphi 0, %s150
      %s152 = sphi 0, %s150
      %s153 = sphi 0, %s152
      %s167 = sphi 0, %s153
      %s171 = sphi 0, %s171
      %s173 = sphi 0, %s171
      %s174 = sphi 0, %s173
      %s188 = sphi 0, %s174
      %s192 = sphi 0, %s192
      %s194 = sphi 0, %s192
      %s195 = sphi 0, %s194
      %s209 = sphi 0, %s195
      %s213 = sphi 0, %s213
      %s215 = sphi 0, %s213
      %s216 = sphi 0, %s215
      %s230 = sphi 0, %s216
      %s234 = sphi 0, %s234
      %s236 = sphi 0, %s234
      %s237 = sphi 0, %s236
      %s251 = sphi 0, %s237
      %s255 = sphi 0, %s255
      %s257 = sphi 0, %s255
      %s258 = sphi 0, %s257
      %s272 = sphi 0, %s258
      %s276 = sphi 0, %s276
      %s278 = sphi 0, %s276
      %s279 = sphi 0, %s278
      %s293 = sphi 0, %s279
      %s297 = sphi 0, %s297
      %s299 = sphi 0, %s297
      %s300 = sphi 0, %s299
      %s314 = sphi 0, %s300
      %s318 = sphi 0, %s318
      %s320 = sphi 0, %s318
      %s321 = sphi 0, %s320
      %s335 = sphi 0, %s321
      %s339 = sphi 0, %s339
      %s341 = sphi 0, %s339
      %s342 = sphi 0, %s341
      %s356 = sphi 0, %s342
      %s360 = sphi 0, %s360
      %s362 = sphi 0, %s360
      %s363 = sphi 0, %s362
      %s377 = sphi 0, %s363
      %s381 = sphi 0, %s381
      %s383 = sphi 0, %s381
      %s384 = sphi 0, %s383
      %s398 = sphi 0, %s384
      %s404 = sphi 0, %s406
      %s407 = sphi 0, %s404
      %s408 = sphi 0, %s407
      %s424 = sphi 0, %s408
    $region4: #{tpu_custom_call.1} parent=1 // loop_header_branch
      %35 = sbr.rel (%p33) target = $region8
    $region5: #{tpu_custom_call.1} parent=1 // loop_body
      %s37 = ssub.s32 %s32, 1
      %s38 = ssub.s32 %s32, 2
      %s39 = sadd.s32 %s32, 1
      %s40 = ssub.s32 %s32, %s39
      %p41 = scmp.eq.s32.totalorder %s40, 0
      %s43 = sadd.s32 %s42, 1
      %s44 = scalar_select %p41, %s42, %s43
      %p47 = pneg %p41
      %p48 = scmp.eq.s32.totalorder %s32, 1
      %p49 = por %p47, %p48
      %p50 = scmp.ne.s32.totalorder %s42, %s45
      %p51 = scmp.eq.s32.totalorder %s32, 0
      %p52 = por %p50, %p51
      %p53 = scmp.ne.s32.totalorder %s42, %s45
      %p54 = scmp.eq.s32.totalorder %s37, 1
      %p55 = por %p53, %p54
      %p56 = scmp.ne.s32.totalorder %s45, %s46
      %p57 = scmp.eq.s32.totalorder %s37, 0
      %p58 = por %p56, %p57
      %p59 = scmp.ne.s32.totalorder %s45, %s46
      %p60 = scmp.eq.s32.totalorder %s38, 1
      %p61 = por %p59, %p60
      %p63 = scmp.ne.s32.totalorder %s46, %s62
      %p64 = scmp.eq.s32.totalorder %s38, 0
      %p65 = por %p63, %p64
      %s67 = sadd.s32 %s66, 1
      %p70 = scmp.eq.s32.totalorder %s32, 1
      %p71 = scmp.ne.s32.totalorder %s66, %s68
      %p72 = scmp.eq.s32.totalorder %s32, 0
      %p73 = por %p71, %p72
      %p74 = scmp.ne.s32.totalorder %s66, %s68
      %p75 = scmp.eq.s32.totalorder %s37, 1
      %p76 = por %p74, %p75
      %p77 = scmp.ne.s32.totalorder %s68, %s69
      %p78 = scmp.eq.s32.totalorder %s37, 0
      %p79 = por %p77, %p78
      %p80 = scmp.ne.s32.totalorder %s68, %s69
      %p81 = scmp.eq.s32.totalorder %s38, 1
      %p82 = por %p80, %p81
      %p84 = scmp.ne.s32.totalorder %s69, %s83
      %p85 = scmp.eq.s32.totalorder %s38, 0
      %p86 = por %p84, %p85
      %s88 = sadd.s32 %s87, 1
      %p91 = scmp.eq.s32.totalorder %s32, 1
      %p92 = scmp.ne.s32.totalorder %s87, %s89
      %p93 = scmp.eq.s32.totalorder %s32, 0
      %p94 = por %p92, %p93
      %p95 = scmp.ne.s32.totalorder %s87, %s89
      %p96 = scmp.eq.s32.totalorder %s37, 1
      %p97 = por %p95, %p96
      %p98 = scmp.ne.s32.totalorder %s89, %s90
      %p99 = scmp.eq.s32.totalorder %s37, 0
      %p100 = por %p98, %p99
      %p101 = scmp.ne.s32.totalorder %s89, %s90
      %p102 = scmp.eq.s32.totalorder %s38, 1
      %p103 = por %p101, %p102
      %p105 = scmp.ne.s32.totalorder %s90, %s104
      %p106 = scmp.eq.s32.totalorder %s38, 0
      %p107 = por %p105, %p106
      %s109 = sadd.s32 %s108, 1
      %p112 = scmp.eq.s32.totalorder %s32, 1
      %p113 = scmp.ne.s32.totalorder %s108, %s110
      %p114 = scmp.eq.s32.totalorder %s32, 0
      %p115 = por %p113, %p114
      %p116 = scmp.ne.s32.totalorder %s108, %s110
      %p117 = scmp.eq.s32.totalorder %s37, 1
      %p118 = por %p116, %p117
      %p119 = scmp.ne.s32.totalorder %s110, %s111
      %p120 = scmp.eq.s32.totalorder %s37, 0
      %p121 = por %p119, %p120
      %p122 = scmp.ne.s32.totalorder %s110, %s111
      %p123 = scmp.eq.s32.totalorder %s38, 1
      %p124 = por %p122, %p123
      %p126 = scmp.ne.s32.totalorder %s111, %s125
      %p127 = scmp.eq.s32.totalorder %s38, 0
      %p128 = por %p126, %p127
      %s130 = sadd.s32 %s129, 1
      %p133 = scmp.eq.s32.totalorder %s32, 1
      %p134 = scmp.ne.s32.totalorder %s129, %s131
      %p135 = scmp.eq.s32.totalorder %s32, 0
      %p136 = por %p134, %p135
      %p137 = scmp.ne.s32.totalorder %s129, %s131
      %p138 = scmp.eq.s32.totalorder %s37, 1
      %p139 = por %p137, %p138
      %p140 = scmp.ne.s32.totalorder %s131, %s132
      %p141 = scmp.eq.s32.totalorder %s37, 0
      %p142 = por %p140, %p141
      %p143 = scmp.ne.s32.totalorder %s131, %s132
      %p144 = scmp.eq.s32.totalorder %s38, 1
      %p145 = por %p143, %p144
      %p147 = scmp.ne.s32.totalorder %s132, %s146
      %p148 = scmp.eq.s32.totalorder %s38, 0
      %p149 = por %p147, %p148
      %s151 = sadd.s32 %s150, 1
      %p154 = scmp.eq.s32.totalorder %s32, 1
      %p155 = scmp.ne.s32.totalorder %s150, %s152
      %p156 = scmp.eq.s32.totalorder %s32, 0
      %p157 = por %p155, %p156
      %p158 = scmp.ne.s32.totalorder %s150, %s152
      %p159 = scmp.eq.s32.totalorder %s37, 1
      %p160 = por %p158, %p159
      %p161 = scmp.ne.s32.totalorder %s152, %s153
      %p162 = scmp.eq.s32.totalorder %s37, 0
      %p163 = por %p161, %p162
      %p164 = scmp.ne.s32.totalorder %s152, %s153
      %p165 = scmp.eq.s32.totalorder %s38, 1
      %p166 = por %p164, %p165
      %p168 = scmp.ne.s32.totalorder %s153, %s167
      %p169 = scmp.eq.s32.totalorder %s38, 0
      %p170 = por %p168, %p169
      %s172 = sadd.s32 %s171, 1
      %p175 = scmp.eq.s32.totalorder %s32, 1
      %p176 = scmp.ne.s32.totalorder %s171, %s173
      %p177 = scmp.eq.s32.totalorder %s32, 0
      %p178 = por %p176, %p177
      %p179 = scmp.ne.s32.totalorder %s171, %s173
      %p180 = scmp.eq.s32.totalorder %s37, 1
      %p181 = por %p179, %p180
      %p182 = scmp.ne.s32.totalorder %s173, %s174
      %p183 = scmp.eq.s32.totalorder %s37, 0
      %p184 = por %p182, %p183
      %p185 = scmp.ne.s32.totalorder %s173, %s174
      %p186 = scmp.eq.s32.totalorder %s38, 1
      %p187 = por %p185, %p186
      %p189 = scmp.ne.s32.totalorder %s174, %s188
      %p190 = scmp.eq.s32.totalorder %s38, 0
      %p191 = por %p189, %p190
      %s193 = sadd.s32 %s192, 1
      %p196 = scmp.eq.s32.totalorder %s32, 1
      %p197 = scmp.ne.s32.totalorder %s192, %s194
      %p198 = scmp.eq.s32.totalorder %s32, 0
      %p199 = por %p197, %p198
      %p200 = scmp.ne.s32.totalorder %s192, %s194
      %p201 = scmp.eq.s32.totalorder %s37, 1
      %p202 = por %p200, %p201
      %p203 = scmp.ne.s32.totalorder %s194, %s195
      %p204 = scmp.eq.s32.totalorder %s37, 0
      %p205 = por %p203, %p204
      %p206 = scmp.ne.s32.totalorder %s194, %s195
      %p207 = scmp.eq.s32.totalorder %s38, 1
      %p208 = por %p206, %p207
      %p210 = scmp.ne.s32.totalorder %s195, %s209
      %p211 = scmp.eq.s32.totalorder %s38, 0
      %p212 = por %p210, %p211
      %s214 = sadd.s32 %s213, 1
      %p217 = scmp.eq.s32.totalorder %s32, 1
      %p218 = scmp.ne.s32.totalorder %s213, %s215
      %p219 = scmp.eq.s32.totalorder %s32, 0
      %p220 = por %p218, %p219
      %p221 = scmp.ne.s32.totalorder %s213, %s215
      %p222 = scmp.eq.s32.totalorder %s37, 1
      %p223 = por %p221, %p222
      %p224 = scmp.ne.s32.totalorder %s215, %s216
      %p225 = scmp.eq.s32.totalorder %s37, 0
      %p226 = por %p224, %p225
      %p227 = scmp.ne.s32.totalorder %s215, %s216
      %p228 = scmp.eq.s32.totalorder %s38, 1
      %p229 = por %p227, %p228
      %p231 = scmp.ne.s32.totalorder %s216, %s230
      %p232 = scmp.eq.s32.totalorder %s38, 0
      %p233 = por %p231, %p232
      %s235 = sadd.s32 %s234, 1
      %p238 = scmp.eq.s32.totalorder %s32, 1
      %p239 = scmp.ne.s32.totalorder %s234, %s236
      %p240 = scmp.eq.s32.totalorder %s32, 0
      %p241 = por %p239, %p240
      %p242 = scmp.ne.s32.totalorder %s234, %s236
      %p243 = scmp.eq.s32.totalorder %s37, 1
      %p244 = por %p242, %p243
      %p245 = scmp.ne.s32.totalorder %s236, %s237
      %p246 = scmp.eq.s32.totalorder %s37, 0
      %p247 = por %p245, %p246
      %p248 = scmp.ne.s32.totalorder %s236, %s237
      %p249 = scmp.eq.s32.totalorder %s38, 1
      %p250 = por %p248, %p249
      %p252 = scmp.ne.s32.totalorder %s237, %s251
      %p253 = scmp.eq.s32.totalorder %s38, 0
      %p254 = por %p252, %p253
      %s256 = sadd.s32 %s255, 1
      %p259 = scmp.eq.s32.totalorder %s32, 1
      %p260 = scmp.ne.s32.totalorder %s255, %s257
      %p261 = scmp.eq.s32.totalorder %s32, 0
      %p262 = por %p260, %p261
      %p263 = scmp.ne.s32.totalorder %s255, %s257
      %p264 = scmp.eq.s32.totalorder %s37, 1
      %p265 = por %p263, %p264
      %p266 = scmp.ne.s32.totalorder %s257, %s258
      %p267 = scmp.eq.s32.totalorder %s37, 0
      %p268 = por %p266, %p267
      %p269 = scmp.ne.s32.totalorder %s257, %s258
      %p270 = scmp.eq.s32.totalorder %s38, 1
      %p271 = por %p269, %p270
      %p273 = scmp.ne.s32.totalorder %s258, %s272
      %p274 = scmp.eq.s32.totalorder %s38, 0
      %p275 = por %p273, %p274
      %s277 = sadd.s32 %s276, 1
      %p280 = scmp.eq.s32.totalorder %s32, 1
      %p281 = scmp.ne.s32.totalorder %s276, %s278
      %p282 = scmp.eq.s32.totalorder %s32, 0
      %p283 = por %p281, %p282
      %p284 = scmp.ne.s32.totalorder %s276, %s278
      %p285 = scmp.eq.s32.totalorder %s37, 1
      %p286 = por %p284, %p285
      %p287 = scmp.ne.s32.totalorder %s278, %s279
      %p288 = scmp.eq.s32.totalorder %s37, 0
      %p289 = por %p287, %p288
      %p290 = scmp.ne.s32.totalorder %s278, %s279
      %p291 = scmp.eq.s32.totalorder %s38, 1
      %p292 = por %p290, %p291
      %p294 = scmp.ne.s32.totalorder %s279, %s293
      %p295 = scmp.eq.s32.totalorder %s38, 0
      %p296 = por %p294, %p295
      %s298 = sadd.s32 %s297, 1
      %p301 = scmp.eq.s32.totalorder %s32, 1
      %p302 = scmp.ne.s32.totalorder %s297, %s299
      %p303 = scmp.eq.s32.totalorder %s32, 0
      %p304 = por %p302, %p303
      %p305 = scmp.ne.s32.totalorder %s297, %s299
      %p306 = scmp.eq.s32.totalorder %s37, 1
      %p307 = por %p305, %p306
      %p308 = scmp.ne.s32.totalorder %s299, %s300
      %p309 = scmp.eq.s32.totalorder %s37, 0
      %p310 = por %p308, %p309
      %p311 = scmp.ne.s32.totalorder %s299, %s300
      %p312 = scmp.eq.s32.totalorder %s38, 1
      %p313 = por %p311, %p312
      %p315 = scmp.ne.s32.totalorder %s300, %s314
      %p316 = scmp.eq.s32.totalorder %s38, 0
      %p317 = por %p315, %p316
      %s319 = sadd.s32 %s318, 1
      %p322 = scmp.eq.s32.totalorder %s32, 1
      %p323 = scmp.ne.s32.totalorder %s318, %s320
      %p324 = scmp.eq.s32.totalorder %s32, 0
      %p325 = por %p323, %p324
      %p326 = scmp.ne.s32.totalorder %s318, %s320
      %p327 = scmp.eq.s32.totalorder %s37, 1
      %p328 = por %p326, %p327
      %p329 = scmp.ne.s32.totalorder %s320, %s321
      %p330 = scmp.eq.s32.totalorder %s37, 0
      %p331 = por %p329, %p330
      %p332 = scmp.ne.s32.totalorder %s320, %s321
      %p333 = scmp.eq.s32.totalorder %s38, 1
      %p334 = por %p332, %p333
      %p336 = scmp.ne.s32.totalorder %s321, %s335
      %p337 = scmp.eq.s32.totalorder %s38, 0
      %p338 = por %p336, %p337
      %s340 = sadd.s32 %s339, 1
      %p343 = scmp.eq.s32.totalorder %s32, 1
      %p344 = scmp.ne.s32.totalorder %s339, %s341
      %p345 = scmp.eq.s32.totalorder %s32, 0
      %p346 = por %p344, %p345
      %p347 = scmp.ne.s32.totalorder %s339, %s341
      %p348 = scmp.eq.s32.totalorder %s37, 1
      %p349 = por %p347, %p348
      %p350 = scmp.ne.s32.totalorder %s341, %s342
      %p351 = scmp.eq.s32.totalorder %s37, 0
      %p352 = por %p350, %p351
      %p353 = scmp.ne.s32.totalorder %s341, %s342
      %p354 = scmp.eq.s32.totalorder %s38, 1
      %p355 = por %p353, %p354
      %p357 = scmp.ne.s32.totalorder %s342, %s356
      %p358 = scmp.eq.s32.totalorder %s38, 0
      %p359 = por %p357, %p358
      %s361 = sadd.s32 %s360, 1
      %p364 = scmp.eq.s32.totalorder %s32, 1
      %p365 = scmp.ne.s32.totalorder %s360, %s362
      %p366 = scmp.eq.s32.totalorder %s32, 0
      %p367 = por %p365, %p366
      %p368 = scmp.ne.s32.totalorder %s360, %s362
      %p369 = scmp.eq.s32.totalorder %s37, 1
      %p370 = por %p368, %p369
      %p371 = scmp.ne.s32.totalorder %s362, %s363
      %p372 = scmp.eq.s32.totalorder %s37, 0
      %p373 = por %p371, %p372
      %p374 = scmp.ne.s32.totalorder %s362, %s363
      %p375 = scmp.eq.s32.totalorder %s38, 1
      %p376 = por %p374, %p375
      %p378 = scmp.ne.s32.totalorder %s363, %s377
      %p379 = scmp.eq.s32.totalorder %s38, 0
      %p380 = por %p378, %p379
      %s382 = sadd.s32 %s381, 1
      %p385 = scmp.eq.s32.totalorder %s32, 1
      %p386 = scmp.ne.s32.totalorder %s381, %s383
      %p387 = scmp.eq.s32.totalorder %s32, 0
      %p388 = por %p386, %p387
      %p389 = scmp.ne.s32.totalorder %s381, %s383
      %p390 = scmp.eq.s32.totalorder %s37, 1
      %p391 = por %p389, %p390
      %p392 = scmp.ne.s32.totalorder %s383, %s384
      %p393 = scmp.eq.s32.totalorder %s37, 0
      %p394 = por %p392, %p393
      %p395 = scmp.ne.s32.totalorder %s383, %s384
      %p396 = scmp.eq.s32.totalorder %s38, 1
      %p397 = por %p395, %p396
      %p399 = scmp.ne.s32.totalorder %s384, %s398
      %p400 = scmp.eq.s32.totalorder %s38, 0
      %p401 = por %p399, %p400
      %s402 = ssub.s32 %s32, %s39
      %p403 = scmp.eq.s32.totalorder %s402, 0
      %s405 = sadd.s32 %s404, 1
      %s406 = scalar_select %p403, %s404, %s405
      %p409 = pneg %p403
      %p410 = scmp.eq.s32.totalorder %s32, 1
      %p411 = por %p409, %p410
      %p412 = scmp.ne.s32.totalorder %s404, %s407
      %p413 = scmp.eq.s32.totalorder %s32, 0
      %p414 = por %p412, %p413
      %p415 = scmp.ne.s32.totalorder %s404, %s407
      %p416 = scmp.eq.s32.totalorder %s37, 1
      %p417 = por %p415, %p416
      %p418 = scmp.ne.s32.totalorder %s407, %s408
      %p419 = scmp.eq.s32.totalorder %s37, 0
      %p420 = por %p418, %p419
      %p421 = scmp.ne.s32.totalorder %s407, %s408
      %p422 = scmp.eq.s32.totalorder %s38, 1
      %p423 = por %p421, %p422
      %p425 = scmp.ne.s32.totalorder %s408, %s424
      %p426 = scmp.eq.s32.totalorder %s38, 0
      %p427 = por %p425, %p426
      %p428 = scmp.le.s32.totalorder 1, %s32
      %p429 = scmp.lt.s32.totalorder %s32, 3
      %p430 = pnand %p428, %p429
      %p431 = pneg %p430
      // Predicated region
      $region9: #{tpu_custom_call.1} parent=5 // pred_check
        _
      $region10: #{tpu_custom_call.1} parent=5 // pred_check_branch
        %433 = sbr.rel (%p430) target = $region12
      $region11: #{tpu_custom_call.1} parent=5 // pred_region
        %s434 = ssub.s32 %s32, 1
        // Predicated region
        $region13: #{tpu_custom_call.1} parent=11 // pred_check
          %p435 = pneg %p79
        $region14: #{tpu_custom_call.1} parent=11 // pred_check_branch
          %437 = sbr.rel (%p435) target = $region16
        $region15: #{tpu_custom_call.1} parent=11 // pred_region
          %439 = vsyncadd [#allocation6], 0
          %s440 = sshll.u32 %s1, 4
          %s441 = int_to_ptr.hbm [resolvable:$true] %s440
          %s442 = sshll.u32 [#allocation5], 4
          %s443 = int_to_ptr.vmem [resolvable:$true] %s442
          %448 = dma.hbm_to_vmem [thread:$0]  %s441, 1024, %s443, [#allocation6], 64, 64, 4
        $region16: #{tpu_custom_call.1} parent=11 // pred_fallthru
          _
        // Predicated region
        $region17: #{tpu_custom_call.1} parent=11 // pred_check
          %p449 = pneg %p100
        $region18: #{tpu_custom_call.1} parent=11 // pred_check_branch
          %451 = sbr.rel (%p449) target = $region20
        $region19: #{tpu_custom_call.1} parent=11 // pred_region
          _
        $region20: #{tpu_custom_call.1} parent=11 // pred_fallthru
          _
        // Predicated region
        $region21: #{tpu_custom_call.1} parent=11 // pred_check
          %p452 = pneg %p121
        $region22: #{tpu_custom_call.1} parent=11 // pred_check_branch
          %454 = sbr.rel (%p452) target = $region24
        $region23: #{tpu_custom_call.1} parent=11 // pred_region
          %456 = vsyncadd [#allocation6], 0
          %s457 = sshll.u32 %s3, 4
          %s458 = int_to_ptr.hbm [resolvable:$true] %s457
          %s459 = sshll.u32 [#allocation7], 4
          %s460 = int_to_ptr.vmem [resolvable:$true] %s459
          %465 = dma.hbm_to_vmem [thread:$0]  %s458, 1024, %s460, [#allocation6], 64, 64, 4
        $region24: #{tpu_custom_call.1} parent=11 // pred_fallthru
          _
        // Predicated region
        $region25: #{tpu_custom_call.1} parent=11 // pred_check
          %p466 = pneg %p142
        $region26: #{tpu_custom_call.1} parent=11 // pred_check_branch
          %468 = sbr.rel (%p466) target = $region28
        $region27: #{tpu_custom_call.1} parent=11 // pred_region
          _
        $region28: #{tpu_custom_call.1} parent=11 // pred_fallthru
          _
        // Predicated region
        $region29: #{tpu_custom_call.1} parent=11 // pred_check
          %p469 = pneg %p163
        $region30: #{tpu_custom_call.1} parent=11 // pred_check_branch
          %471 = sbr.rel (%p469) target = $region32
        $region31: #{tpu_custom_call.1} parent=11 // pred_region
          %473 = vsyncadd [#allocation9], 0
          %s474 = sshll.u32 %s5, 4
          %s475 = int_to_ptr.hbm [resolvable:$true] %s474
          %s476 = sshll.u32 [#allocation8], 4
          %s477 = int_to_ptr.vmem [resolvable:$true] %s476
          %482 = dma.hbm_to_vmem [thread:$0]  %s475, 1024, %s477, [#allocation9], 64, 64, 4
        $region32: #{tpu_custom_call.1} parent=11 // pred_fallthru
          _
        // Predicated region
        $region33: #{tpu_custom_call.1} parent=11 // pred_check
          %p483 = pneg %p184
        $region34: #{tpu_custom_call.1} parent=11 // pred_check_branch
          %485 = sbr.rel (%p483) target = $region36
        $region35: #{tpu_custom_call.1} parent=11 // pred_region
          _
        $region36: #{tpu_custom_call.1} parent=11 // pred_fallthru
          _
        // Predicated region
        $region37: #{tpu_custom_call.1} parent=11 // pred_check
          %p486 = pneg %p205
        $region38: #{tpu_custom_call.1} parent=11 // pred_check_branch
          %488 = sbr.rel (%p486) target = $region40
        $region39: #{tpu_custom_call.1} parent=11 // pred_region
          %490 = vsyncadd [#allocation9], 0
          %s491 = sshll.u32 %s7, 4
          %s492 = int_to_ptr.hbm [resolvable:$true] %s491
          %s493 = sshll.u32 [#allocation10], 4
          %s494 = int_to_ptr.vmem [resolvable:$true] %s493
          %499 = dma.hbm_to_vmem [thread:$0]  %s492, 1024, %s494, [#allocation9], 64, 64, 4
        $region40: #{tpu_custom_call.1} parent=11 // pred_fallthru
          _
        // Predicated region
        $region41: #{tpu_custom_call.1} parent=11 // pred_check
          %p500 = pneg %p226
        $region42: #{tpu_custom_call.1} parent=11 // pred_check_branch
          %502 = sbr.rel (%p500) target = $region44
        $region43: #{tpu_custom_call.1} parent=11 // pred_region
          _
        $region44: #{tpu_custom_call.1} parent=11 // pred_fallthru
          _
        // Predicated region
        $region45: #{tpu_custom_call.1} parent=11 // pred_check
          %p503 = pneg %p247
        $region46: #{tpu_custom_call.1} parent=11 // pred_check_branch
          %505 = sbr.rel (%p503) target = $region48
        $region47: #{tpu_custom_call.1} parent=11 // pred_region
          _
        $region48: #{tpu_custom_call.1} parent=11 // pred_fallthru
          _
        // Predicated region
        $region49: #{tpu_custom_call.1} parent=11 // pred_check
          %p506 = pneg %p268
        $region50: #{tpu_custom_call.1} parent=11 // pred_check_branch
          %508 = sbr.rel (%p506) target = $region52
        $region51: #{tpu_custom_call.1} parent=11 // pred_region
          _
        $region52: #{tpu_custom_call.1} parent=11 // pred_fallthru
          _
        // Predicated region
        $region53: #{tpu_custom_call.1} parent=11 // pred_check
          %p509 = pneg %p289
        $region54: #{tpu_custom_call.1} parent=11 // pred_check_branch
          %511 = sbr.rel (%p509) target = $region56
        $region55: #{tpu_custom_call.1} parent=11 // pred_region
          %513 = vsyncadd [#allocation12], 0
          %s514 = sshll.u32 %s11, 4
          %s515 = int_to_ptr.hbm [resolvable:$true] %s514
          %s516 = sshll.u32 [#allocation11], 4
          %s517 = int_to_ptr.vmem [resolvable:$true] %s516
          %522 = dma.hbm_to_vmem [thread:$0]  %s515, 1024, %s517, [#allocation12], 64, 64, 4
        $region56: #{tpu_custom_call.1} parent=11 // pred_fallthru
          _
        // Predicated region
        $region57: #{tpu_custom_call.1} parent=11 // pred_check
          %p523 = pneg %p310
        $region58: #{tpu_custom_call.1} parent=11 // pred_check_branch
          %525 = sbr.rel (%p523) target = $region60
        $region59: #{tpu_custom_call.1} parent=11 // pred_region
          _
        $region60: #{tpu_custom_call.1} parent=11 // pred_fallthru
          _
        // Predicated region
        $region61: #{tpu_custom_call.1} parent=11 // pred_check
          %p526 = pneg %p331
        $region62: #{tpu_custom_call.1} parent=11 // pred_check_branch
          %528 = sbr.rel (%p526) target = $region64
        $region63: #{tpu_custom_call.1} parent=11 // pred_region
          %530 = vsyncadd [#allocation12], 0
          %s531 = sshll.u32 %s13, 4
          %s532 = int_to_ptr.hbm [resolvable:$true] %s531
          %s533 = sshll.u32 [#allocation13], 4
          %s534 = int_to_ptr.vmem [resolvable:$true] %s533
          %539 = dma.hbm_to_vmem [thread:$0]  %s532, 1024, %s534, [#allocation12], 64, 64, 4
        $region64: #{tpu_custom_call.1} parent=11 // pred_fallthru
          _
        // Predicated region
        $region65: #{tpu_custom_call.1} parent=11 // pred_check
          %p540 = pneg %p352
        $region66: #{tpu_custom_call.1} parent=11 // pred_check_branch
          %542 = sbr.rel (%p540) target = $region68
        $region67: #{tpu_custom_call.1} parent=11 // pred_region
          _
        $region68: #{tpu_custom_call.1} parent=11 // pred_fallthru
          _
        // Predicated region
        $region69: #{tpu_custom_call.1} parent=11 // pred_check
          %p543 = pneg %p373
        $region70: #{tpu_custom_call.1} parent=11 // pred_check_branch
          %545 = sbr.rel (%p543) target = $region72
        $region71: #{tpu_custom_call.1} parent=11 // pred_region
          _
        $region72: #{tpu_custom_call.1} parent=11 // pred_fallthru
          _
        // Predicated region
        $region73: #{tpu_custom_call.1} parent=11 // pred_check
          %p546 = pneg %p394
        $region74: #{tpu_custom_call.1} parent=11 // pred_check_branch
          %548 = sbr.rel (%p546) target = $region76
        $region75: #{tpu_custom_call.1} parent=11 // pred_region
          _
        $region76: #{tpu_custom_call.1} parent=11 // pred_fallthru
          _
      $region12: #{tpu_custom_call.1} parent=5 // pred_fallthru
        _
      %p549 = scmp.lt.s32.totalorder %s32, 2
      // Predicated region
      $region77: #{tpu_custom_call.1} parent=5 // pred_check
        %p550 = pneg %p549
      $region78: #{tpu_custom_call.1} parent=5 // pred_check_branch
        %552 = sbr.rel (%p550) target = $region80
      $region79: #{tpu_custom_call.1} parent=5 // pred_region
        // Predicated region
        $region81: #{tpu_custom_call.1} parent=79 // pred_check
          %p553 = pneg %p52
        $region82: #{tpu_custom_call.1} parent=79 // pred_check_branch
          %555 = sbr.rel (%p553) target = $region84
        $region83: #{tpu_custom_call.1} parent=79 // pred_region
          %s556 = sand.u32 %s42, 1
          %s557 = scalar_lea.sflag [#allocation3], %s556
          %s558 = sand.u32 %s42, 1
          %s559 = smul.addr %s558, 16
          %s560 = scalar_lea.vmem [#allocation2], %s559
          %s561 = smul.u32 2, %s32
          %563 = vsyncadd %s557, 0
          %s564 = smul.addr %s561, 8
          %s565 = scalar_lea.hbm %s0, %s564
          %s566 = sshll.u32 %s565, 4
          %s567 = int_to_ptr.hbm [resolvable:$true] %s566
          %s568 = sshll.u32 %s560, 4
          %s569 = int_to_ptr.vmem [resolvable:$true] %s568
          %574 = dma.hbm_to_vmem [thread:$0]  %s567, 256, %s569, %s557, 128, 128, 8
        $region84: #{tpu_custom_call.1} parent=79 // pred_fallthru
          _
      $region80: #{tpu_custom_call.1} parent=5 // pred_fallthru
        _
      %p575 = scmp.le.s32.totalorder 1, %s32
      %p576 = scmp.lt.s32.totalorder %s32, 3
      %p577 = pnand %p575, %p576
      %p578 = pneg %p577
      // Predicated region
      $region85: #{tpu_custom_call.1} parent=5 // pred_check
        _
      $region86: #{tpu_custom_call.1} parent=5 // pred_check_branch
        %580 = sbr.rel (%p577) target = $region88
      $region87: #{tpu_custom_call.1} parent=5 // pred_region
        %s581 = ssub.s32 %s32, 1
        %s582 = sand.u32 %s45, 1
        %s583 = scalar_lea.sflag [#allocation3], %s582
        %s584 = sand.u32 %s45, 1
        %s585 = smul.addr %s584, 16
        %s586 = scalar_lea.vmem [#allocation2], %s585
        // Predicated region
        $region89: #{tpu_custom_call.1} parent=87 // pred_check
          %p587 = pneg %p58
        $region90: #{tpu_custom_call.1} parent=87 // pred_check_branch
          %589 = sbr.rel (%p587) target = $region92
        $region91: #{tpu_custom_call.1} parent=87 // pred_region
          %591 = dma.done %s583, 256
        $region92: #{tpu_custom_call.1} parent=87 // pred_fallthru
          _
        // Predicated region
        $region93: #{tpu_custom_call.1} parent=87 // pred_check
          %p592 = pneg %p79
        $region94: #{tpu_custom_call.1} parent=87 // pred_check_branch
          %594 = sbr.rel (%p592) target = $region96
        $region95: #{tpu_custom_call.1} parent=87 // pred_region
          %596 = dma.done [#allocation6], 1024
        $region96: #{tpu_custom_call.1} parent=87 // pred_fallthru
          _
        // Predicated region
        $region97: #{tpu_custom_call.1} parent=87 // pred_check
          %p597 = pneg %p121
        $region98: #{tpu_custom_call.1} parent=87 // pred_check_branch
          %599 = sbr.rel (%p597) target = $region100
        $region99: #{tpu_custom_call.1} parent=87 // pred_region
          %601 = dma.done [#allocation6], 1024
        $region100: #{tpu_custom_call.1} parent=87 // pred_fallthru
          _
        // Predicated region
        $region101: #{tpu_custom_call.1} parent=87 // pred_check
          %p602 = pneg %p163
        $region102: #{tpu_custom_call.1} parent=87 // pred_check_branch
          %604 = sbr.rel (%p602) target = $region104
        $region103: #{tpu_custom_call.1} parent=87 // pred_region
          %606 = dma.done [#allocation9], 1024
        $region104: #{tpu_custom_call.1} parent=87 // pred_fallthru
          _
        // Predicated region
        $region105: #{tpu_custom_call.1} parent=87 // pred_check
          %p607 = pneg %p205
        $region106: #{tpu_custom_call.1} parent=87 // pred_check_branch
          %609 = sbr.rel (%p607) target = $region108
        $region107: #{tpu_custom_call.1} parent=87 // pred_region
          %611 = dma.done [#allocation9], 1024
        $region108: #{tpu_custom_call.1} parent=87 // pred_fallthru
          _
        // Predicated region
        $region109: #{tpu_custom_call.1} parent=87 // pred_check
          %p612 = pneg %p289
        $region110: #{tpu_custom_call.1} parent=87 // pred_check_branch
          %614 = sbr.rel (%p612) target = $region112
        $region111: #{tpu_custom_call.1} parent=87 // pred_region
          %616 = dma.done [#allocation12], 1024
        $region112: #{tpu_custom_call.1} parent=87 // pred_fallthru
          _
        // Predicated region
        $region113: #{tpu_custom_call.1} parent=87 // pred_check
          %p617 = pneg %p331
        $region114: #{tpu_custom_call.1} parent=87 // pred_check_branch
          %619 = sbr.rel (%p617) target = $region116
        $region115: #{tpu_custom_call.1} parent=87 // pred_region
          %621 = dma.done [#allocation12], 1024
        $region116: #{tpu_custom_call.1} parent=87 // pred_fallthru
          _
        %s622 = sand.u32 %s45, 1
        %s623 = scalar_lea.sflag [#allocation3], %s622
        %s624 = sand.u32 %s45, 1
        %s625 = smul.addr %s624, 16
        %s626 = scalar_lea.vmem [#allocation2], %s625
        %p627 = pneg %p58
        %p628 = pneg %p55
        %p629 = pneg %p79
        %p630 = pneg %p76
        %p631 = pneg %p100
        %p632 = pneg %p97
        %p633 = pneg %p121
        %p634 = pneg %p118
        %p635 = pneg %p142
        %p636 = pneg %p139
        %p637 = pneg %p163
        %p638 = pneg %p160
        %p639 = pneg %p184
        %p640 = pneg %p181
        %p641 = pneg %p205
        %p642 = pneg %p202
        %p643 = pneg %p226
        %p644 = pneg %p223
        %p645 = pneg %p247
        %p646 = pneg %p244
        %p647 = pneg %p268
        %p648 = pneg %p265
        %p649 = pneg %p289
        %p650 = pneg %p286
        %p651 = pneg %p310
        %p652 = pneg %p307
        %p653 = pneg %p331
        %p654 = pneg %p328
        %p655 = pneg %p352
        %p656 = pneg %p349
        %p657 = pneg %p373
        %p658 = pneg %p370
        %p659 = pneg %p394
        %p660 = pneg %p391
        %p661 = pneg %p420
        %p662 = pneg %p417
        %s663 = sand.u32 %s407, 1
        %s664 = scalar_lea.sflag [#allocation4], %s663
        %s665 = sand.u32 %s407, 1
        %s666 = smul.addr %s665, 16
        %s667 = scalar_lea.vmem [#allocation14], %s666
        %s668 = smul.u32 2, %s37
        %s669 = smul.u32 2, %s37
        %v671 = vld [vmem:[%s586] sm:$0xff]
        %v672 = vld [vmem:[%s586 + $0x8] sm:$0xff]
        %v673 = vpack.c.bf16 %v672, %v671
        %v674 = vld [vmem:[#allocation5] sm:$0xf]
        %v675 = vld [vmem:[#allocation5 + $0x4] sm:$0xf]
        %v676 = vld [vmem:[#allocation5 + $0x8] sm:$0xf]
        %v677 = vld [vmem:[#allocation5 + $0xc] sm:$0xf]
        %v678 = vld [vmem:[#allocation5 + $0x10] sm:$0xf]
        %v679 = vld [vmem:[#allocation5 + $0x14] sm:$0xf]
        %v680 = vld [vmem:[#allocation5 + $0x18] sm:$0xf]
        %v681 = vld [vmem:[#allocation5 + $0x1c] sm:$0xf]
        %v682 = vld [vmem:[#allocation5 + $0x20] sm:$0xf]
        %v683 = vld [vmem:[#allocation5 + $0x24] sm:$0xf]
        %v684 = vld [vmem:[#allocation5 + $0x28] sm:$0xf]
        %v685 = vld [vmem:[#allocation5 + $0x2c] sm:$0xf]
        %v686 = vld [vmem:[#allocation5 + $0x30] sm:$0xf]
        %v687 = vld [vmem:[#allocation5 + $0x34] sm:$0xf]
        %v688 = vld [vmem:[#allocation5 + $0x38] sm:$0xf]
        %v689 = vld [vmem:[#allocation5 + $0x3c] sm:$0xf]
        %v690 = vld [vmem:[%s2] sm:$0x1]
        %v692 = vperm.slane %v690, 0
        %v710 = vunpack.c.l.b16 %v674
        %v711 = vunpack.c.l.b16 %v675
        %v712 = vunpack.c.l.b16 %v676
        %v713 = vunpack.c.l.b16 %v677
        %v714 = vunpack.c.l.b16 %v678
        %v715 = vunpack.c.l.b16 %v679
        %v716 = vunpack.c.l.b16 %v680
        %v717 = vunpack.c.l.b16 %v681
        %v718 = vunpack.c.l.b16 %v682
        %v719 = vunpack.c.l.b16 %v683
        %v720 = vunpack.c.l.b16 %v684
        %v721 = vunpack.c.l.b16 %v685
        %v722 = vunpack.c.l.b16 %v686
        %v723 = vunpack.c.l.b16 %v687
        %v724 = vunpack.c.l.b16 %v688
        %v725 = vunpack.c.l.b16 %v689
        %v726 = vpack.c.b16 %v711, %v710
        %v727 = vpack.c.b16 %v713, %v712
        %v728 = vpack.c.b16 %v715, %v714
        %v729 = vpack.c.b16 %v717, %v716
        %v730 = vpack.c.b16 %v719, %v718
        %v731 = vpack.c.b16 %v721, %v720
        %v732 = vpack.c.b16 %v723, %v722
        %v733 = vpack.c.b16 %v725, %v724
        %742 = vmatpush.bf16.msra.mxu0 %v733
        %743 = vmatpush.bf16.msra.mxu0 %v732
        %744 = vmatpush.bf16.msra.mxu0 %v731
        %745 = vmatpush.bf16.msra.mxu0 %v730
        %746 = vmatpush.bf16.msra.mxu0 %v729
        %747 = vmatpush.bf16.msra.mxu0 %v728
        %748 = vmatpush.bf16.msra.mxu0 %v727
        %749 = vmatpush.bf16.msra.mxu0 %v726
        %750 = vmatmul.bf16.gmra.mxu0 %v673
        %v751 = vpop.f32.mrf.mxu0
        %v752 = vadd.f32 %v692, %v751
        %v753 = vpop.f32.mrf.mxu0
        %v754 = vadd.f32 %v692, %v753
        %755 = vdwg.mxu0
        %v756 = vpack.c.bf16 %v752, %v752
        %v757 = vpack.c.bf16 %v754, %v754
        %v758 = vld [vmem:[#allocation7] sm:$0xf]
        %v759 = vld [vmem:[#allocation7 + $0x4] sm:$0xf]
        %v760 = vld [vmem:[#allocation7 + $0x8] sm:$0xf]
        %v761 = vld [vmem:[#allocation7 + $0xc] sm:$0xf]
        %v762 = vld [vmem:[#allocation7 + $0x10] sm:$0xf]
        %v763 = vld [vmem:[#allocation7 + $0x14] sm:$0xf]
        %v764 = vld [vmem:[#allocation7 + $0x18] sm:$0xf]
        %v765 = vld [vmem:[#allocation7 + $0x1c] sm:$0xf]
        %v766 = vld [vmem:[#allocation7 + $0x20] sm:$0xf]
        %v767 = vld [vmem:[#allocation7 + $0x24] sm:$0xf]
        %v768 = vld [vmem:[#allocation7 + $0x28] sm:$0xf]
        %v769 = vld [vmem:[#allocation7 + $0x2c] sm:$0xf]
        %v770 = vld [vmem:[#allocation7 + $0x30] sm:$0xf]
        %v771 = vld [vmem:[#allocation7 + $0x34] sm:$0xf]
        %v772 = vld [vmem:[#allocation7 + $0x38] sm:$0xf]
        %v773 = vld [vmem:[#allocation7 + $0x3c] sm:$0xf]
        %v774 = vld [vmem:[%s4] sm:$0x1]
        %v776 = vperm.slane %v774, 0
        %v794 = vunpack.c.l.b16 %v758
        %v795 = vunpack.c.l.b16 %v759
        %v796 = vunpack.c.l.b16 %v760
        %v797 = vunpack.c.l.b16 %v761
        %v798 = vunpack.c.l.b16 %v762
        %v799 = vunpack.c.l.b16 %v763
        %v800 = vunpack.c.l.b16 %v764
        %v801 = vunpack.c.l.b16 %v765
        %v802 = vunpack.c.l.b16 %v766
        %v803 = vunpack.c.l.b16 %v767
        %v804 = vunpack.c.l.b16 %v768
        %v805 = vunpack.c.l.b16 %v769
        %v806 = vunpack.c.l.b16 %v770
        %v807 = vunpack.c.l.b16 %v771
        %v808 = vunpack.c.l.b16 %v772
        %v809 = vunpack.c.l.b16 %v773
        %v810 = vpack.c.b16 %v795, %v794
        %v811 = vpack.c.b16 %v797, %v796
        %v812 = vpack.c.b16 %v799, %v798
        %v813 = vpack.c.b16 %v801, %v800
        %v814 = vpack.c.b16 %v803, %v802
        %v815 = vpack.c.b16 %v805, %v804
        %v816 = vpack.c.b16 %v807, %v806
        %v817 = vpack.c.b16 %v809, %v808
        %826 = vmatpush.bf16.msra.mxu0 %v817
        %827 = vmatpush.bf16.msra.mxu0 %v816
        %828 = vmatpush.bf16.msra.mxu0 %v815
        %829 = vmatpush.bf16.msra.mxu0 %v814
        %830 = vmatpush.bf16.msra.mxu0 %v813
        %831 = vmatpush.bf16.msra.mxu0 %v812
        %832 = vmatpush.bf16.msra.mxu0 %v811
        %833 = vmatpush.bf16.msra.mxu0 %v810
        %834 = vmatmul.bf16.gmra.mxu0 %v673
        %v835 = vpop.f32.mrf.mxu0
        %v836 = vadd.f32 %v776, %v835
        %v837 = vpop.f32.mrf.mxu0
        %v838 = vadd.f32 %v776, %v837
        %839 = vdwg.mxu0
        %v840 = vpack.c.bf16 %v836, %v836
        %v841 = vpack.c.bf16 %v838, %v838
        %v842 = vld [vmem:[#allocation8] sm:$0xf]
        %v843 = vld [vmem:[#allocation8 + $0x4] sm:$0xf]
        %v844 = vld [vmem:[#allocation8 + $0x8] sm:$0xf]
        %v845 = vld [vmem:[#allocation8 + $0xc] sm:$0xf]
        %v846 = vld [vmem:[#allocation8 + $0x10] sm:$0xf]
        %v847 = vld [vmem:[#allocation8 + $0x14] sm:$0xf]
        %v848 = vld [vmem:[#allocation8 + $0x18] sm:$0xf]
        %v849 = vld [vmem:[#allocation8 + $0x1c] sm:$0xf]
        %v850 = vld [vmem:[#allocation8 + $0x20] sm:$0xf]
        %v851 = vld [vmem:[#allocation8 + $0x24] sm:$0xf]
        %v852 = vld [vmem:[#allocation8 + $0x28] sm:$0xf]
        %v853 = vld [vmem:[#allocation8 + $0x2c] sm:$0xf]
        %v854 = vld [vmem:[#allocation8 + $0x30] sm:$0xf]
        %v855 = vld [vmem:[#allocation8 + $0x34] sm:$0xf]
        %v856 = vld [vmem:[#allocation8 + $0x38] sm:$0xf]
        %v857 = vld [vmem:[#allocation8 + $0x3c] sm:$0xf]
        %v858 = vld [vmem:[%s6] sm:$0x1]
        %v860 = vperm.slane %v858, 0
        %v878 = vunpack.c.l.b16 %v842
        %v879 = vunpack.c.l.b16 %v843
        %v880 = vunpack.c.l.b16 %v844
        %v881 = vunpack.c.l.b16 %v845
        %v882 = vunpack.c.l.b16 %v846
        %v883 = vunpack.c.l.b16 %v847
        %v884 = vunpack.c.l.b16 %v848
        %v885 = vunpack.c.l.b16 %v849
        %v886 = vunpack.c.l.b16 %v850
        %v887 = vunpack.c.l.b16 %v851
        %v888 = vunpack.c.l.b16 %v852
        %v889 = vunpack.c.l.b16 %v853
        %v890 = vunpack.c.l.b16 %v854
        %v891 = vunpack.c.l.b16 %v855
        %v892 = vunpack.c.l.b16 %v856
        %v893 = vunpack.c.l.b16 %v857
        %v894 = vpack.c.b16 %v879, %v878
        %v895 = vpack.c.b16 %v881, %v880
        %v896 = vpack.c.b16 %v883, %v882
        %v897 = vpack.c.b16 %v885, %v884
        %v898 = vpack.c.b16 %v887, %v886
        %v899 = vpack.c.b16 %v889, %v888
        %v900 = vpack.c.b16 %v891, %v890
        %v901 = vpack.c.b16 %v893, %v892
        %910 = vmatpush.bf16.msra.mxu0 %v901
        %911 = vmatpush.bf16.msra.mxu0 %v900
        %912 = vmatpush.bf16.msra.mxu0 %v899
        %913 = vmatpush.bf16.msra.mxu0 %v898
        %914 = vmatpush.bf16.msra.mxu0 %v897
        %915 = vmatpush.bf16.msra.mxu0 %v896
        %916 = vmatpush.bf16.msra.mxu0 %v895
        %917 = vmatpush.bf16.msra.mxu0 %v894
        %918 = vmatmul.bf16.gmra.mxu0 %v673
        %v919 = vpop.f32.mrf.mxu0
        %v920 = vadd.f32 %v860, %v919
        %v921 = vpop.f32.mrf.mxu0
        %v922 = vadd.f32 %v860, %v921
        %923 = vdwg.mxu0
        %v924 = vpack.c.bf16 %v920, %v920
        %v925 = vpack.c.bf16 %v922, %v922
        %v926 = vld [vmem:[#allocation10] sm:$0xf]
        %v927 = vld [vmem:[#allocation10 + $0x4] sm:$0xf]
        %v928 = vld [vmem:[#allocation10 + $0x8] sm:$0xf]
        %v929 = vld [vmem:[#allocation10 + $0xc] sm:$0xf]
        %v930 = vld [vmem:[#allocation10 + $0x10] sm:$0xf]
        %v931 = vld [vmem:[#allocation10 + $0x14] sm:$0xf]
        %v932 = vld [vmem:[#allocation10 + $0x18] sm:$0xf]
        %v933 = vld [vmem:[#allocation10 + $0x1c] sm:$0xf]
        %v934 = vld [vmem:[#allocation10 + $0x20] sm:$0xf]
        %v935 = vld [vmem:[#allocation10 + $0x24] sm:$0xf]
        %v936 = vld [vmem:[#allocation10 + $0x28] sm:$0xf]
        %v937 = vld [vmem:[#allocation10 + $0x2c] sm:$0xf]
        %v938 = vld [vmem:[#allocation10 + $0x30] sm:$0xf]
        %v939 = vld [vmem:[#allocation10 + $0x34] sm:$0xf]
        %v940 = vld [vmem:[#allocation10 + $0x38] sm:$0xf]
        %v941 = vld [vmem:[#allocation10 + $0x3c] sm:$0xf]
        %vm942 = vcmask 261120
        %v944 = vsel %vm942, %v756, 0
        %v947 = vsel %vm942, %v840, 0
        %949 = vmatpush.bf16.xpose.msra.mxu0 0
        %950 = vmatpush.bf16.xpose.msra.mxu0 0
        %951 = vmatpush.bf16.xpose.msra.mxu0 0
        %952 = vmatpush.bf16.xpose.msra.mxu0 0
        %953 = vmatpush.bf16.xpose.msra.mxu0 0
        %954 = vmatpush.bf16.xpose.msra.mxu0 0
        %955 = vmatpush.bf16.xpose.msra.mxu0 0
        %956 = vmatpush.bf16.xpose.msra.mxu0 %v947
        %957 = vmatmul.bf16.gmra.mxu0 %v944
        %v958 = vpop.f32.mrf.mxu0
        %v959 = vadd.f32 0.0, %v958
        %v960 = vpop.f32.mrf.mxu0
        %961 = vdwg.mxu0
        %v963 = vsel %vm942, %v757, 0
        %v966 = vsel %vm942, %v841, 0
        %968 = vmatpush.bf16.xpose.msra.mxu0 0
        %969 = vmatpush.bf16.xpose.msra.mxu0 0
        %970 = vmatpush.bf16.xpose.msra.mxu0 0
        %971 = vmatpush.bf16.xpose.msra.mxu0 0
        %972 = vmatpush.bf16.xpose.msra.mxu0 0
        %973 = vmatpush.bf16.xpose.msra.mxu0 0
        %974 = vmatpush.bf16.xpose.msra.mxu0 0
        %975 = vmatpush.bf16.xpose.msra.mxu0 %v966
        %976 = vmatmul.bf16.gmra.mxu0 %v963
        %v977 = vpop.f32.mrf.mxu0
        %v978 = vadd.f32 0.0, %v977
        %v979 = vpop.f32.mrf.mxu0
        %980 = vdwg.mxu0
        %vm981 = vcmask 64512
        %v982 = vsel %vm981, %v959, -inf
        %983 = vmax.xlane.f32.xlu0 %v982
        %v984 = vpop.xlane.xlu0 %983
        %v985 = vsel %vm981, %v978, -inf
        %986 = vmax.xlane.f32.xlu0 %v985
        %v987 = vpop.xlane.xlu0 %986
        %v988 = vsub.f32 %v959, %v984
        %v989 = vsub.f32 %v978, %v987
        %v990 = vmul.f32 %v988, 1.442695
        %v991 = vpow.pop %v990
        %v992 = vmul.f32 %v989, 1.442695
        %v993 = vpow.pop %v992
        %v994 = vsel %vm981, %v991, 0.0
        %995 = vadd.xlane.f32.xlu0 %v994
        %v996 = vpop.xlane.xlu0 %995
        %v997 = vsel %vm981, %v993, 0.0
        %998 = vadd.xlane.f32.xlu0 %v997
        %v999 = vpop.xlane.xlu0 %998
        %v1000 = vrcp.pop %v996
        %v1001 = vrcp.pop %v999
        %v1002 = vmul.f32 %v991, %v1000
        %v1003 = vmul.f32 %v993, %v1001
        %v1004 = vpack.c.bf16 %v1002, %v1002
        %v1005 = vpack.c.bf16 %v1003, %v1003
        %v1007 = vsel %vm981, %v1004, 0
        %vm1009 = vcmask 1043456
        %v1011 = vsel %vm1009, %v924, 0
        %1013 = vmatpush.bf16.msra.mxu0 0
        %1014 = vmatpush.bf16.msra.mxu0 0
        %1015 = vmatpush.bf16.msra.mxu0 0
        %1016 = vmatpush.bf16.msra.mxu0 0
        %1017 = vmatpush.bf16.msra.mxu0 0
        %1018 = vmatpush.bf16.msra.mxu0 0
        %1019 = vmatpush.bf16.msra.mxu0 0
        %1020 = vmatpush.bf16.msra.mxu0 %v1011
        %1021 = vmatmul.bf16.gmra.mxu0 %v1007
        %v1022 = vpop.f32.mrf.mxu0
        %v1023 = vadd.f32 0.0, %v1022
        %v1024 = vpop.f32.mrf.mxu0
        %1025 = vdwg.mxu0
        %v1027 = vsel %vm981, %v1005, 0
        %v1030 = vsel %vm1009, %v925, 0
        %1032 = vmatpush.bf16.msra.mxu0 0
        %1033 = vmatpush.bf16.msra.mxu0 0
        %1034 = vmatpush.bf16.msra.mxu0 0
        %1035 = vmatpush.bf16.msra.mxu0 0
        %1036 = vmatpush.bf16.msra.mxu0 0
        %1037 = vmatpush.bf16.msra.mxu0 0
        %1038 = vmatpush.bf16.msra.mxu0 0
        %1039 = vmatpush.bf16.msra.mxu0 %v1030
        %1040 = vmatmul.bf16.gmra.mxu0 %v1027
        %v1041 = vpop.f32.mrf.mxu0
        %v1042 = vadd.f32 0.0, %v1041
        %v1043 = vpop.f32.mrf.mxu0
        %1044 = vdwg.mxu0
        %v1045 = vpack.c.bf16 %v1042, %v1023
        %v1047 = vunpack.c.l.b16 %v756
        %v1048 = vpack.c.b16 %v1047, %v1047
        %1049 = vrot.lane.b32.xlu0 %v1048, 96
        %v1050 = vpop.permute.xlu0 %1049
        %v1052 = vunpack.c.l.b16 %v840
        %v1053 = vpack.c.b16 %v1052, %v1052
        %1054 = vrot.lane.b32.xlu0 %v1053, 96
        %v1055 = vpop.permute.xlu0 %1054
        %v1057 = vsel %vm942, %v1050, 0
        %v1060 = vsel %vm942, %v1055, 0
        %1062 = vmatpush.bf16.xpose.msra.mxu0 0
        %1063 = vmatpush.bf16.xpose.msra.mxu0 0
        %1064 = vmatpush.bf16.xpose.msra.mxu0 0
        %1065 = vmatpush.bf16.xpose.msra.mxu0 0
        %1066 = vmatpush.bf16.xpose.msra.mxu0 0
        %1067 = vmatpush.bf16.xpose.msra.mxu0 0
        %1068 = vmatpush.bf16.xpose.msra.mxu0 0
        %1069 = vmatpush.bf16.xpose.msra.mxu0 %v1060
        %1070 = vmatmul.bf16.gmra.mxu0 %v1057
        %v1071 = vpop.f32.mrf.mxu0
        %v1072 = vadd.f32 0.0, %v1071
        %v1073 = vpop.f32.mrf.mxu0
        %1074 = vdwg.mxu0
        %v1076 = vunpack.c.l.b16 %v757
        %v1077 = vpack.c.b16 %v1076, %v1076
        %1078 = vrot.lane.b32.xlu0 %v1077, 96
        %v1079 = vpop.permute.xlu0 %1078
        %v1081 = vunpack.c.l.b16 %v841
        %v1082 = vpack.c.b16 %v1081, %v1081
        %1083 = vrot.lane.b32.xlu0 %v1082, 96
        %v1084 = vpop.permute.xlu0 %1083
        %v1086 = vsel %vm942, %v1079, 0
        %v1089 = vsel %vm942, %v1084, 0
        %1091 = vmatpush.bf16.xpose.msra.mxu0 0
        %1092 = vmatpush.bf16.xpose.msra.mxu0 0
        %1093 = vmatpush.bf16.xpose.msra.mxu0 0
        %1094 = vmatpush.bf16.xpose.msra.mxu0 0
        %1095 = vmatpush.bf16.xpose.msra.mxu0 0
        %1096 = vmatpush.bf16.xpose.msra.mxu0 0
        %1097 = vmatpush.bf16.xpose.msra.mxu0 0
        %1098 = vmatpush.bf16.xpose.msra.mxu0 %v1089
        %1099 = vmatmul.bf16.gmra.mxu0 %v1086
        %v1100 = vpop.f32.mrf.mxu0
        %v1101 = vadd.f32 0.0, %v1100
        %v1102 = vpop.f32.mrf.mxu0
        %1103 = vdwg.mxu0
        %v1104 = vsel %vm981, %v1072, -inf
        %1105 = vmax.xlane.f32.xlu0 %v1104
        %v1106 = vpop.xlane.xlu0 %1105
        %v1107 = vsel %vm981, %v1101, -inf
        %1108 = vmax.xlane.f32.xlu0 %v1107
        %v1109 = vpop.xlane.xlu0 %1108
        %v1110 = vsub.f32 %v1072, %v1106
        %v1111 = vsub.f32 %v1101, %v1109
        %v1112 = vmul.f32 %v1110, 1.442695
        %v1113 = vpow.pop %v1112
        %v1114 = vmul.f32 %v1111, 1.442695
        %v1115 = vpow.pop %v1114
        %v1116 = vsel %vm981, %v1113, 0.0
        %1117 = vadd.xlane.f32.xlu0 %v1116
        %v1118 = vpop.xlane.xlu0 %1117
        %v1119 = vsel %vm981, %v1115, 0.0
        %1120 = vadd.xlane.f32.xlu0 %v1119
        %v1121 = vpop.xlane.xlu0 %1120
        %v1122 = vrcp.pop %v1118
        %v1123 = vrcp.pop %v1121
        %v1124 = vmul.f32 %v1113, %v1122
        %v1125 = vmul.f32 %v1115, %v1123
        %v1126 = vpack.c.bf16 %v1124, %v1124
        %v1127 = vpack.c.bf16 %v1125, %v1125
        %v1129 = vunpack.c.l.b16 %v924
        %v1130 = vpack.c.b16 %v1129, %v1129
        %1131 = vrot.lane.b32.xlu0 %v1130, 96
        %v1132 = vpop.permute.xlu0 %1131
        %v1134 = vsel %vm981, %v1126, 0
        %v1137 = vsel %vm1009, %v1132, 0
        %1139 = vmatpush.bf16.msra.mxu0 0
        %1140 = vmatpush.bf16.msra.mxu0 0
        %1141 = vmatpush.bf16.msra.mxu0 0
        %1142 = vmatpush.bf16.msra.mxu0 0
        %1143 = vmatpush.bf16.msra.mxu0 0
        %1144 = vmatpush.bf16.msra.mxu0 0
        %1145 = vmatpush.bf16.msra.mxu0 0
        %1146 = vmatpush.bf16.msra.mxu0 %v1137
        %1147 = vmatmul.bf16.gmra.mxu0 %v1134
        %v1148 = vpop.f32.mrf.mxu0
        %v1149 = vadd.f32 0.0, %v1148
        %v1150 = vpop.f32.mrf.mxu0
        %1151 = vdwg.mxu0
        %v1153 = vunpack.c.l.b16 %v925
        %v1154 = vpack.c.b16 %v1153, %v1153
        %1155 = vrot.lane.b32.xlu0 %v1154, 96
        %v1156 = vpop.permute.xlu0 %1155
        %v1158 = vsel %vm981, %v1127, 0
        %v1161 = vsel %vm1009, %v1156, 0
        %1163 = vmatpush.bf16.msra.mxu0 0
        %1164 = vmatpush.bf16.msra.mxu0 0
        %1165 = vmatpush.bf16.msra.mxu0 0
        %1166 = vmatpush.bf16.msra.mxu0 0
        %1167 = vmatpush.bf16.msra.mxu0 0
        %1168 = vmatpush.bf16.msra.mxu0 0
        %1169 = vmatpush.bf16.msra.mxu0 0
        %1170 = vmatpush.bf16.msra.mxu0 %v1161
        %1171 = vmatmul.bf16.gmra.mxu0 %v1158
        %v1172 = vpop.f32.mrf.mxu0
        %v1173 = vadd.f32 0.0, %v1172
        %v1174 = vpop.f32.mrf.mxu0
        %1175 = vdwg.mxu0
        %v1176 = vpack.c.bf16 %v1173, %v1149
        %v1181 = vunpack.c.l.b16 %v930
        %v1182 = vunpack.c.l.b16 %v931
        %v1183 = vunpack.c.l.b16 %v932
        %v1184 = vunpack.c.l.b16 %v933
        %v1185 = vpack.c.b16 %v1182, %v1181
        %v1186 = vpack.c.b16 %v1184, %v1183
        %v1190 = vsel %vm942, %v1176, 0
        %1192 = vmatpush.bf16.msra.mxu0 0
        %1193 = vmatpush.bf16.msra.mxu0 0
        %1194 = vmatpush.bf16.msra.mxu0 0
        %1195 = vmatpush.bf16.msra.mxu0 0
        %1196 = vmatpush.bf16.msra.mxu0 0
        %1197 = vmatpush.bf16.msra.mxu0 0
        %1198 = vmatpush.bf16.msra.mxu0 %v1186
        %1199 = vmatpush.bf16.msra.mxu0 %v1185
        %1200 = vmatmul.bf16.gmra.mxu0 %v1190
        %v1201 = vpop.f32.mrf.mxu0
        %v1202 = vadd.f32 0.0, %v1201
        %v1203 = vpop.f32.mrf.mxu0
        %v1204 = vadd.f32 0.0, %v1203
        %1205 = vdwg.mxu0
        %v1210 = vunpack.c.l.b16 %v926
        %v1211 = vunpack.c.l.b16 %v927
        %v1212 = vunpack.c.l.b16 %v928
        %v1213 = vunpack.c.l.b16 %v929
        %v1214 = vpack.c.b16 %v1211, %v1210
        %v1215 = vpack.c.b16 %v1213, %v1212
        %v1219 = vsel %vm942, %v1045, 0
        %1221 = vmatpush.bf16.msra.mxu0 0
        %1222 = vmatpush.bf16.msra.mxu0 0
        %1223 = vmatpush.bf16.msra.mxu0 0
        %1224 = vmatpush.bf16.msra.mxu0 0
        %1225 = vmatpush.bf16.msra.mxu0 0
        %1226 = vmatpush.bf16.msra.mxu0 0
        %1227 = vmatpush.bf16.msra.mxu0 %v1215
        %1228 = vmatpush.bf16.msra.mxu0 %v1214
        %1229 = vmatmul.bf16.gmra.mxu0 %v1219
        %v1230 = vpop.f32.mrf.mxu0
        %v1231 = vadd.f32 %v1202, %v1230
        %v1232 = vpop.f32.mrf.mxu0
        %v1233 = vadd.f32 %v1204, %v1232
        %1234 = vdwg.mxu0
        %1235 = vrot.lane.b32.xlu0 %v1048, 64
        %v1236 = vpop.permute.xlu0 %1235
        %1237 = vrot.lane.b32.xlu0 %v1053, 64
        %v1238 = vpop.permute.xlu0 %1237
        %v1240 = vsel %vm942, %v1236, 0
        %v1243 = vsel %vm942, %v1238, 0
        %1245 = vmatpush.bf16.xpose.msra.mxu0 0
        %1246 = vmatpush.bf16.xpose.msra.mxu0 0
        %1247 = vmatpush.bf16.xpose.msra.mxu0 0
        %1248 = vmatpush.bf16.xpose.msra.mxu0 0
        %1249 = vmatpush.bf16.xpose.msra.mxu0 0
        %1250 = vmatpush.bf16.xpose.msra.mxu0 0
        %1251 = vmatpush.bf16.xpose.msra.mxu0 0
        %1252 = vmatpush.bf16.xpose.msra.mxu0 %v1243
        %1253 = vmatmul.bf16.gmra.mxu0 %v1240
        %v1254 = vpop.f32.mrf.mxu0
        %v1255 = vadd.f32 0.0, %v1254
        %v1256 = vpop.f32.mrf.mxu0
        %1257 = vdwg.mxu0
        %1258 = vrot.lane.b32.xlu0 %v1077, 64
        %v1259 = vpop.permute.xlu0 %1258
        %1260 = vrot.lane.b32.xlu0 %v1082, 64
        %v1261 = vpop.permute.xlu0 %1260
        %v1263 = vsel %vm942, %v1259, 0
        %v1266 = vsel %vm942, %v1261, 0
        %1268 = vmatpush.bf16.xpose.msra.mxu0 0
        %1269 = vmatpush.bf16.xpose.msra.mxu0 0
        %1270 = vmatpush.bf16.xpose.msra.mxu0 0
        %1271 = vmatpush.bf16.xpose.msra.mxu0 0
        %1272 = vmatpush.bf16.xpose.msra.mxu0 0
        %1273 = vmatpush.bf16.xpose.msra.mxu0 0
        %1274 = vmatpush.bf16.xpose.msra.mxu0 0
        %1275 = vmatpush.bf16.xpose.msra.mxu0 %v1266
        %1276 = vmatmul.bf16.gmra.mxu0 %v1263
        %v1277 = vpop.f32.mrf.mxu0
        %v1278 = vadd.f32 0.0, %v1277
        %v1279 = vpop.f32.mrf.mxu0
        %1280 = vdwg.mxu0
        %v1281 = vsel %vm981, %v1255, -inf
        %1282 = vmax.xlane.f32.xlu0 %v1281
        %v1283 = vpop.xlane.xlu0 %1282
        %v1284 = vsel %vm981, %v1278, -inf
        %1285 = vmax.xlane.f32.xlu0 %v1284
        %v1286 = vpop.xlane.xlu0 %1285
        %v1287 = vsub.f32 %v1255, %v1283
        %v1288 = vsub.f32 %v1278, %v1286
        %v1289 = vmul.f32 %v1287, 1.442695
        %v1290 = vpow.pop %v1289
        %v1291 = vmul.f32 %v1288, 1.442695
        %v1292 = vpow.pop %v1291
        %v1293 = vsel %vm981, %v1290, 0.0
        %1294 = vadd.xlane.f32.xlu0 %v1293
        %v1295 = vpop.xlane.xlu0 %1294
        %v1296 = vsel %vm981, %v1292, 0.0
        %1297 = vadd.xlane.f32.xlu0 %v1296
        %v1298 = vpop.xlane.xlu0 %1297
        %v1299 = vrcp.pop %v1295
        %v1300 = vrcp.pop %v1298
        %v1301 = vmul.f32 %v1290, %v1299
        %v1302 = vmul.f32 %v1292, %v1300
        %v1303 = vpack.c.bf16 %v1301, %v1301
        %v1304 = vpack.c.bf16 %v1302, %v1302
        %1305 = vrot.lane.b32.xlu0 %v1130, 64
        %v1306 = vpop.permute.xlu0 %1305
        %v1308 = vsel %vm981, %v1303, 0
        %v1311 = vsel %vm1009, %v1306, 0
        %1313 = vmatpush.bf16.msra.mxu0 0
        %1314 = vmatpush.bf16.msra.mxu0 0
        %1315 = vmatpush.bf16.msra.mxu0 0
        %1316 = vmatpush.bf16.msra.mxu0 0
        %1317 = vmatpush.bf16.msra.mxu0 0
        %1318 = vmatpush.bf16.msra.mxu0 0
        %1319 = vmatpush.bf16.msra.mxu0 0
        %1320 = vmatpush.bf16.msra.mxu0 %v1311
        %1321 = vmatmul.bf16.gmra.mxu0 %v1308
        %v1322 = vpop.f32.mrf.mxu0
        %v1323 = vadd.f32 0.0, %v1322
        %v1324 = vpop.f32.mrf.mxu0
        %1325 = vdwg.mxu0
        %1326 = vrot.lane.b32.xlu0 %v1154, 64
        %v1327 = vpop.permute.xlu0 %1326
        %v1329 = vsel %vm981, %v1304, 0
        %v1332 = vsel %vm1009, %v1327, 0
        %1334 = vmatpush.bf16.msra.mxu0 0
        %1335 = vmatpush.bf16.msra.mxu0 0
        %1336 = vmatpush.bf16.msra.mxu0 0
        %1337 = vmatpush.bf16.msra.mxu0 0
        %1338 = vmatpush.bf16.msra.mxu0 0
        %1339 = vmatpush.bf16.msra.mxu0 0
        %1340 = vmatpush.bf16.msra.mxu0 0
        %1341 = vmatpush.bf16.msra.mxu0 %v1332
        %1342 = vmatmul.bf16.gmra.mxu0 %v1329
        %v1343 = vpop.f32.mrf.mxu0
        %v1344 = vadd.f32 0.0, %v1343
        %v1345 = vpop.f32.mrf.mxu0
        %1346 = vdwg.mxu0
        %v1347 = vpack.c.bf16 %v1344, %v1323
        %v1352 = vunpack.c.l.b16 %v934
        %v1353 = vunpack.c.l.b16 %v935
        %v1354 = vunpack.c.l.b16 %v936
        %v1355 = vunpack.c.l.b16 %v937
        %v1356 = vpack.c.b16 %v1353, %v1352
        %v1357 = vpack.c.b16 %v1355, %v1354
        %v1361 = vsel %vm942, %v1347, 0
        %1363 = vmatpush.bf16.msra.mxu0 0
        %1364 = vmatpush.bf16.msra.mxu0 0
        %1365 = vmatpush.bf16.msra.mxu0 0
        %1366 = vmatpush.bf16.msra.mxu0 0
        %1367 = vmatpush.bf16.msra.mxu0 0
        %1368 = vmatpush.bf16.msra.mxu0 0
        %1369 = vmatpush.bf16.msra.mxu0 %v1357
        %1370 = vmatpush.bf16.msra.mxu0 %v1356
        %1371 = vmatmul.bf16.gmra.mxu0 %v1361
        %v1372 = vpop.f32.mrf.mxu0
        %v1373 = vadd.f32 0.0, %v1372
        %v1374 = vpop.f32.mrf.mxu0
        %v1375 = vadd.f32 0.0, %v1374
        %1376 = vdwg.mxu0
        %v1377 = vadd.f32 %v1231, %v1373
        %v1378 = vadd.f32 %v1233, %v1375
        %1379 = vrot.lane.b32.xlu0 %v1048, 32
        %v1380 = vpop.permute.xlu0 %1379
        %1381 = vrot.lane.b32.xlu0 %v1053, 32
        %v1382 = vpop.permute.xlu0 %1381
        %v1384 = vsel %vm942, %v1380, 0
        %v1387 = vsel %vm942, %v1382, 0
        %1389 = vmatpush.bf16.xpose.msra.mxu0 0
        %1390 = vmatpush.bf16.xpose.msra.mxu0 0
        %1391 = vmatpush.bf16.xpose.msra.mxu0 0
        %1392 = vmatpush.bf16.xpose.msra.mxu0 0
        %1393 = vmatpush.bf16.xpose.msra.mxu0 0
        %1394 = vmatpush.bf16.xpose.msra.mxu0 0
        %1395 = vmatpush.bf16.xpose.msra.mxu0 0
        %1396 = vmatpush.bf16.xpose.msra.mxu0 %v1387
        %1397 = vmatmul.bf16.gmra.mxu0 %v1384
        %v1398 = vpop.f32.mrf.mxu0
        %v1399 = vadd.f32 0.0, %v1398
        %v1400 = vpop.f32.mrf.mxu0
        %1401 = vdwg.mxu0
        %1402 = vrot.lane.b32.xlu0 %v1077, 32
        %v1403 = vpop.permute.xlu0 %1402
        %1404 = vrot.lane.b32.xlu0 %v1082, 32
        %v1405 = vpop.permute.xlu0 %1404
        %v1407 = vsel %vm942, %v1403, 0
        %v1410 = vsel %vm942, %v1405, 0
        %1412 = vmatpush.bf16.xpose.msra.mxu0 0
        %1413 = vmatpush.bf16.xpose.msra.mxu0 0
        %1414 = vmatpush.bf16.xpose.msra.mxu0 0
        %1415 = vmatpush.bf16.xpose.msra.mxu0 0
        %1416 = vmatpush.bf16.xpose.msra.mxu0 0
        %1417 = vmatpush.bf16.xpose.msra.mxu0 0
        %1418 = vmatpush.bf16.xpose.msra.mxu0 0
        %1419 = vmatpush.bf16.xpose.msra.mxu0 %v1410
        %1420 = vmatmul.bf16.gmra.mxu0 %v1407
        %v1421 = vpop.f32.mrf.mxu0
        %v1422 = vadd.f32 0.0, %v1421
        %v1423 = vpop.f32.mrf.mxu0
        %1424 = vdwg.mxu0
        %v1425 = vsel %vm981, %v1399, -inf
        %1426 = vmax.xlane.f32.xlu0 %v1425
        %v1427 = vpop.xlane.xlu0 %1426
        %v1428 = vsel %vm981, %v1422, -inf
        %1429 = vmax.xlane.f32.xlu0 %v1428
        %v1430 = vpop.xlane.xlu0 %1429
        %v1431 = vsub.f32 %v1399, %v1427
        %v1432 = vsub.f32 %v1422, %v1430
        %v1433 = vmul.f32 %v1431, 1.442695
        %v1434 = vpow.pop %v1433
        %v1435 = vmul.f32 %v1432, 1.442695
        %v1436 = vpow.pop %v1435
        %v1437 = vsel %vm981, %v1434, 0.0
        %1438 = vadd.xlane.f32.xlu0 %v1437
        %v1439 = vpop.xlane.xlu0 %1438
        %v1440 = vsel %vm981, %v1436, 0.0
        %1441 = vadd.xlane.f32.xlu0 %v1440
        %v1442 = vpop.xlane.xlu0 %1441
        %v1443 = vrcp.pop %v1439
        %v1444 = vrcp.pop %v1442
        %v1445 = vmul.f32 %v1434, %v1443
        %v1446 = vmul.f32 %v1436, %v1444
        %v1447 = vpack.c.bf16 %v1445, %v1445
        %v1448 = vpack.c.bf16 %v1446, %v1446
        %1449 = vrot.lane.b32.xlu0 %v1130, 32
        %v1450 = vpop.permute.xlu0 %1449
        %v1452 = vsel %vm981, %v1447, 0
        %v1455 = vsel %vm1009, %v1450, 0
        %1457 = vmatpush.bf16.msra.mxu0 0
        %1458 = vmatpush.bf16.msra.mxu0 0
        %1459 = vmatpush.bf16.msra.mxu0 0
        %1460 = vmatpush.bf16.msra.mxu0 0
        %1461 = vmatpush.bf16.msra.mxu0 0
        %1462 = vmatpush.bf16.msra.mxu0 0
        %1463 = vmatpush.bf16.msra.mxu0 0
        %1464 = vmatpush.bf16.msra.mxu0 %v1455
        %1465 = vmatmul.bf16.gmra.mxu0 %v1452
        %v1466 = vpop.f32.mrf.mxu0
        %v1467 = vadd.f32 0.0, %v1466
        %v1468 = vpop.f32.mrf.mxu0
        %1469 = vdwg.mxu0
        %1470 = vrot.lane.b32.xlu0 %v1154, 32
        %v1471 = vpop.permute.xlu0 %1470
        %v1473 = vsel %vm981, %v1448, 0
        %v1476 = vsel %vm1009, %v1471, 0
        %1478 = vmatpush.bf16.msra.mxu0 0
        %1479 = vmatpush.bf16.msra.mxu0 0
        %1480 = vmatpush.bf16.msra.mxu0 0
        %1481 = vmatpush.bf16.msra.mxu0 0
        %1482 = vmatpush.bf16.msra.mxu0 0
        %1483 = vmatpush.bf16.msra.mxu0 0
        %1484 = vmatpush.bf16.msra.mxu0 0
        %1485 = vmatpush.bf16.msra.mxu0 %v1476
        %1486 = vmatmul.bf16.gmra.mxu0 %v1473
        %v1487 = vpop.f32.mrf.mxu0
        %v1488 = vadd.f32 0.0, %v1487
        %v1489 = vpop.f32.mrf.mxu0
        %1490 = vdwg.mxu0
        %v1491 = vpack.c.bf16 %v1488, %v1467
        %v1496 = vunpack.c.l.b16 %v938
        %v1497 = vunpack.c.l.b16 %v939
        %v1498 = vunpack.c.l.b16 %v940
        %v1499 = vunpack.c.l.b16 %v941
        %v1500 = vpack.c.b16 %v1497, %v1496
        %v1501 = vpack.c.b16 %v1499, %v1498
        %v1505 = vsel %vm942, %v1491, 0
        %1507 = vmatpush.bf16.msra.mxu0 0
        %1508 = vmatpush.bf16.msra.mxu0 0
        %1509 = vmatpush.bf16.msra.mxu0 0
        %1510 = vmatpush.bf16.msra.mxu0 0
        %1511 = vmatpush.bf16.msra.mxu0 0
        %1512 = vmatpush.bf16.msra.mxu0 0
        %1513 = vmatpush.bf16.msra.mxu0 %v1501
        %1514 = vmatpush.bf16.msra.mxu0 %v1500
        %1515 = vmatmul.bf16.gmra.mxu0 %v1505
        %v1516 = vpop.f32.mrf.mxu0
        %v1517 = vadd.f32 0.0, %v1516
        %v1518 = vpop.f32.mrf.mxu0
        %v1519 = vadd.f32 0.0, %v1518
        %1520 = vdwg.mxu0
        %v1521 = vadd.f32 %v1377, %v1517
        %v1522 = vadd.f32 %v1378, %v1519
        %v1523 = vld [vmem:[%s8] sm:$0x1]
        %v1525 = vperm.slane %v1523, 0
        %v1527 = vadd.f32 %v1521, %v1525
        %v1528 = vadd.f32 %v1522, %v1525
        %v1529 = vadd.f32 %v671, %v1527
        %v1530 = vadd.f32 %v672, %v1528
        %v1531 = vld [vmem:[%s9] sm:$0x1]
        %v1532 = vld [vmem:[%s10] sm:$0x1]
        %1533 = vadd.xlane.f32.xlu0 %v1529
        %v1534 = vpop.xlane.xlu0 %1533
        %1535 = vadd.xlane.f32.xlu0 %v1530
        %v1536 = vpop.xlane.xlu0 %1535
        %v1537 = vrcp.pop 128.0
        %v1538 = vmul.f32 128.0, %v1537
        %v1539 = vsub.f32 1.0, %v1538
        %v1540 = vmul.f32 %v1537, %v1539
        %v1541 = vadd.f32 %v1537, %v1540
        %vm1542 = vweird.f32 %v1537
        %v1543 = vsel %vm1542, %v1537, %v1541
        %v1544 = vmul.f32 %v1534, %v1543
        %v1545 = vmul.f32 %v1536, %v1543
        %v1546 = vsub.f32 %v1529, %v1544
        %v1547 = vsub.f32 %v1530, %v1545
        %v1548 = vmul.f32 %v1546, %v1546
        %v1549 = vmul.f32 %v1547, %v1547
        %1550 = vadd.xlane.f32.xlu0 %v1548
        %v1551 = vpop.xlane.xlu0 %1550
        %1552 = vadd.xlane.f32.xlu0 %v1549
        %v1553 = vpop.xlane.xlu0 %1552
        %v1554 = vmul.f32 %v1551, %v1543
        %v1555 = vmul.f32 %v1553, %v1543
        %v1556 = vadd.f32 %v1554, 1e-05
        %v1557 = vadd.f32 %v1555, 1e-05
        %v1558 = vrsqrt.pop %v1556
        %v1559 = vmul.f32 %v1558, %v1556
        %v1560 = vmul.f32 %v1559, %v1558
        %v1561 = vmul.f32 0.5, %v1560
        %v1562 = vsub.f32 1.5, %v1561
        %v1563 = vmul.f32 %v1558, %v1562
        %vm1564 = vweird.f32 %v1556
        %vm1565 = vweird.f32 %v1558
        %vm1566 = vmor %vm1564, %vm1565
        %v1567 = vsel %vm1566, %v1558, %v1563
        %v1568 = vrsqrt.pop %v1557
        %v1569 = vmul.f32 %v1568, %v1557
        %v1570 = vmul.f32 %v1569, %v1568
        %v1571 = vmul.f32 0.5, %v1570
        %v1572 = vsub.f32 1.5, %v1571
        %v1573 = vmul.f32 %v1568, %v1572
        %vm1574 = vweird.f32 %v1557
        %vm1575 = vweird.f32 %v1568
        %vm1576 = vmor %vm1574, %vm1575
        %v1577 = vsel %vm1576, %v1568, %v1573
        %v1578 = vmul.f32 %v1546, %v1567
        %v1579 = vmul.f32 %v1547, %v1577
        %v1581 = vperm.slane %v1531, 0
        %v1583 = vmul.f32 %v1578, %v1581
        %v1584 = vmul.f32 %v1579, %v1581
        %v1586 = vperm.slane %v1532, 0
        %v1588 = vadd.f32 %v1583, %v1586
        %v1589 = vadd.f32 %v1584, %v1586
        %v1590 = vpack.c.bf16 %v1589, %v1588
        %v1591 = vld [vmem:[#allocation11] sm:$0xf]
        %v1592 = vld [vmem:[#allocation11 + $0x4] sm:$0xf]
        %v1593 = vld [vmem:[#allocation11 + $0x8] sm:$0xf]
        %v1594 = vld [vmem:[#allocation11 + $0xc] sm:$0xf]
        %v1595 = vld [vmem:[#allocation11 + $0x10] sm:$0xf]
        %v1596 = vld [vmem:[#allocation11 + $0x14] sm:$0xf]
        %v1597 = vld [vmem:[#allocation11 + $0x18] sm:$0xf]
        %v1598 = vld [vmem:[#allocation11 + $0x1c] sm:$0xf]
        %v1599 = vld [vmem:[#allocation11 + $0x20] sm:$0xf]
        %v1600 = vld [vmem:[#allocation11 + $0x24] sm:$0xf]
        %v1601 = vld [vmem:[#allocation11 + $0x28] sm:$0xf]
        %v1602 = vld [vmem:[#allocation11 + $0x2c] sm:$0xf]
        %v1603 = vld [vmem:[#allocation11 + $0x30] sm:$0xf]
        %v1604 = vld [vmem:[#allocation11 + $0x34] sm:$0xf]
        %v1605 = vld [vmem:[#allocation11 + $0x38] sm:$0xf]
        %v1606 = vld [vmem:[#allocation11 + $0x3c] sm:$0xf]
        %v1607 = vld [vmem:[%s12] sm:$0x1]
        %v1609 = vperm.slane %v1607, 0
        %v1627 = vunpack.c.l.b16 %v1591
        %v1628 = vunpack.c.l.b16 %v1592
        %v1629 = vunpack.c.l.b16 %v1593
        %v1630 = vunpack.c.l.b16 %v1594
        %v1631 = vunpack.c.l.b16 %v1595
        %v1632 = vunpack.c.l.b16 %v1596
        %v1633 = vunpack.c.l.b16 %v1597
        %v1634 = vunpack.c.l.b16 %v1598
        %v1635 = vunpack.c.l.b16 %v1599
        %v1636 = vunpack.c.l.b16 %v1600
        %v1637 = vunpack.c.l.b16 %v1601
        %v1638 = vunpack.c.l.b16 %v1602
        %v1639 = vunpack.c.l.b16 %v1603
        %v1640 = vunpack.c.l.b16 %v1604
        %v1641 = vunpack.c.l.b16 %v1605
        %v1642 = vunpack.c.l.b16 %v1606
        %v1643 = vpack.c.b16 %v1628, %v1627
        %v1644 = vpack.c.b16 %v1630, %v1629
        %v1645 = vpack.c.b16 %v1632, %v1631
        %v1646 = vpack.c.b16 %v1634, %v1633
        %v1647 = vpack.c.b16 %v1636, %v1635
        %v1648 = vpack.c.b16 %v1638, %v1637
        %v1649 = vpack.c.b16 %v1640, %v1639
        %v1650 = vpack.c.b16 %v1642, %v1641
        %1659 = vmatpush.bf16.msra.mxu0 %v1650
        %1660 = vmatpush.bf16.msra.mxu0 %v1649
        %1661 = vmatpush.bf16.msra.mxu0 %v1648
        %1662 = vmatpush.bf16.msra.mxu0 %v1647
        %1663 = vmatpush.bf16.msra.mxu0 %v1646
        %1664 = vmatpush.bf16.msra.mxu0 %v1645
        %1665 = vmatpush.bf16.msra.mxu0 %v1644
        %1666 = vmatpush.bf16.msra.mxu0 %v1643
        %1667 = vmatmul.bf16.gmra.mxu0 %v1590
        %v1668 = vpop.f32.mrf.mxu0
        %v1669 = vadd.f32 %v1609, %v1668
        %v1670 = vpop.f32.mrf.mxu0
        %v1671 = vadd.f32 %v1609, %v1670
        %1672 = vdwg.mxu0
        %v1673 = vmul.f32 %v1669, 0.5
        %v1674 = vmul.f32 %v1671, 0.5
        %v1675 = vmul.f32 %v1669, 0.70710677
        %v1676 = vmul.f32 %v1671, 0.70710677
        %v1677 = vmul.f32 %v1675, %v1675
        %v1678 = vmin.f32 16.0, %v1677
        %v1679 = vmul.f32 %v1678, 2.1237322e-06
        %v1680 = vadd.f32 %v1679, 0.00028619796
        %v1681 = vmul.f32 %v1678, %v1680
        %v1682 = vadd.f32 %v1681, 0.0036580483
        %v1683 = vmul.f32 %v1678, %v1682
        %v1684 = vadd.f32 %v1683, 0.05243302
        %v1685 = vmul.f32 %v1678, %v1684
        %v1686 = vadd.f32 %v1685, 0.18741608
        %v1687 = vmul.f32 %v1678, %v1686
        %v1688 = vadd.f32 %v1687, 1.1283791
        %v1689 = vmul.f32 %v1675, %v1688
        %v1690 = vmul.f32 %v1678, 3.8918573e-05
        %v1691 = vadd.f32 %v1690, 0.001143296
        %v1692 = vmul.f32 %v1678, %v1691
        %v1693 = vadd.f32 %v1692, 0.014752088
        %v1694 = vmul.f32 %v1678, %v1693
        %v1695 = vadd.f32 %v1694, 0.112945676
        %v1696 = vmul.f32 %v1678, %v1695
        %v1697 = vadd.f32 %v1696, 0.4994258
        %v1698 = vmul.f32 %v1678, %v1697
        %v1699 = vadd.f32 %v1698, 1.0
        %v1700 = vrcp.pop %v1699
        %v1701 = vmul.f32 %v1699, %v1700
        %v1702 = vsub.f32 1.0, %v1701
        %v1703 = vmul.f32 %v1700, %v1702
        %v1704 = vadd.f32 %v1700, %v1703
        %vm1705 = vweird.f32 %v1699
        %vm1706 = vweird.f32 %v1700
        %vm1707 = vmor %vm1705, %vm1706
        %v1708 = vsel %vm1707, %v1700, %v1704
        %v1709 = vand.u32 2147483647, %v1699
        %vm1710 = vcmp.eq.f32.partialorder %v1709, 8.507059e+37
        %v1711 = vand.u32 %v1699, 2147483648
        %v1712 = vor.u32 1.1754944e-38, %v1711
        %v1713 = vsel %vm1710, %v1712, %v1708
        %v1714 = vmul.f32 %v1689, %v1713
        %v1715 = vmin.f32 %v1714, 1.0
        %v1716 = vmax.f32 %v1715, -1.0
        %v1717 = vmul.f32 %v1676, %v1676
        %v1718 = vmin.f32 16.0, %v1717
        %v1719 = vmul.f32 %v1718, 2.1237322e-06
        %v1720 = vadd.f32 %v1719, 0.00028619796
        %v1721 = vmul.f32 %v1718, %v1720
        %v1722 = vadd.f32 %v1721, 0.0036580483
        %v1723 = vmul.f32 %v1718, %v1722
        %v1724 = vadd.f32 %v1723, 0.05243302
        %v1725 = vmul.f32 %v1718, %v1724
        %v1726 = vadd.f32 %v1725, 0.18741608
        %v1727 = vmul.f32 %v1718, %v1726
        %v1728 = vadd.f32 %v1727, 1.1283791
        %v1729 = vmul.f32 %v1676, %v1728
        %v1730 = vmul.f32 %v1718, 3.8918573e-05
        %v1731 = vadd.f32 %v1730, 0.001143296
        %v1732 = vmul.f32 %v1718, %v1731
        %v1733 = vadd.f32 %v1732, 0.014752088
        %v1734 = vmul.f32 %v1718, %v1733
        %v1735 = vadd.f32 %v1734, 0.112945676
        %v1736 = vmul.f32 %v1718, %v1735
        %v1737 = vadd.f32 %v1736, 0.4994258
        %v1738 = vmul.f32 %v1718, %v1737
        %v1739 = vadd.f32 %v1738, 1.0
        %v1740 = vrcp.pop %v1739
        %v1741 = vmul.f32 %v1739, %v1740
        %v1742 = vsub.f32 1.0, %v1741
        %v1743 = vmul.f32 %v1740, %v1742
        %v1744 = vadd.f32 %v1740, %v1743
        %vm1745 = vweird.f32 %v1739
        %vm1746 = vweird.f32 %v1740
        %vm1747 = vmor %vm1745, %vm1746
        %v1748 = vsel %vm1747, %v1740, %v1744
        %v1749 = vand.u32 2147483647, %v1739
        %vm1750 = vcmp.eq.f32.partialorder %v1749, 8.507059e+37
        %v1751 = vand.u32 %v1739, 2147483648
        %v1752 = vor.u32 1.1754944e-38, %v1751
        %v1753 = vsel %vm1750, %v1752, %v1748
        %v1754 = vmul.f32 %v1729, %v1753
        %v1755 = vmin.f32 %v1754, 1.0
        %v1756 = vmax.f32 %v1755, -1.0
        %v1757 = vadd.f32 %v1716, 1.0
        %v1758 = vadd.f32 %v1756, 1.0
        %v1759 = vmul.f32 %v1673, %v1757
        %v1760 = vmul.f32 %v1674, %v1758
        %v1761 = vpack.c.bf16 %v1760, %v1759
        %v1762 = vld [vmem:[#allocation13] sm:$0xf]
        %v1763 = vld [vmem:[#allocation13 + $0x4] sm:$0xf]
        %v1764 = vld [vmem:[#allocation13 + $0x8] sm:$0xf]
        %v1765 = vld [vmem:[#allocation13 + $0xc] sm:$0xf]
        %v1766 = vld [vmem:[#allocation13 + $0x10] sm:$0xf]
        %v1767 = vld [vmem:[#allocation13 + $0x14] sm:$0xf]
        %v1768 = vld [vmem:[#allocation13 + $0x18] sm:$0xf]
        %v1769 = vld [vmem:[#allocation13 + $0x1c] sm:$0xf]
        %v1770 = vld [vmem:[#allocation13 + $0x20] sm:$0xf]
        %v1771 = vld [vmem:[#allocation13 + $0x24] sm:$0xf]
        %v1772 = vld [vmem:[#allocation13 + $0x28] sm:$0xf]
        %v1773 = vld [vmem:[#allocation13 + $0x2c] sm:$0xf]
        %v1774 = vld [vmem:[#allocation13 + $0x30] sm:$0xf]
        %v1775 = vld [vmem:[#allocation13 + $0x34] sm:$0xf]
        %v1776 = vld [vmem:[#allocation13 + $0x38] sm:$0xf]
        %v1777 = vld [vmem:[#allocation13 + $0x3c] sm:$0xf]
        %v1778 = vld [vmem:[%s14] sm:$0x1]
        %v1780 = vperm.slane %v1778, 0
        %v1798 = vunpack.c.l.b16 %v1762
        %v1799 = vunpack.c.l.b16 %v1763
        %v1800 = vunpack.c.l.b16 %v1764
        %v1801 = vunpack.c.l.b16 %v1765
        %v1802 = vunpack.c.l.b16 %v1766
        %v1803 = vunpack.c.l.b16 %v1767
        %v1804 = vunpack.c.l.b16 %v1768
        %v1805 = vunpack.c.l.b16 %v1769
        %v1806 = vunpack.c.l.b16 %v1770
        %v1807 = vunpack.c.l.b16 %v1771
        %v1808 = vunpack.c.l.b16 %v1772
        %v1809 = vunpack.c.l.b16 %v1773
        %v1810 = vunpack.c.l.b16 %v1774
        %v1811 = vunpack.c.l.b16 %v1775
        %v1812 = vunpack.c.l.b16 %v1776
        %v1813 = vunpack.c.l.b16 %v1777
        %v1814 = vpack.c.b16 %v1799, %v1798
        %v1815 = vpack.c.b16 %v1801, %v1800
        %v1816 = vpack.c.b16 %v1803, %v1802
        %v1817 = vpack.c.b16 %v1805, %v1804
        %v1818 = vpack.c.b16 %v1807, %v1806
        %v1819 = vpack.c.b16 %v1809, %v1808
        %v1820 = vpack.c.b16 %v1811, %v1810
        %v1821 = vpack.c.b16 %v1813, %v1812
        %1830 = vmatpush.bf16.msra.mxu0 %v1821
        %1831 = vmatpush.bf16.msra.mxu0 %v1820
        %1832 = vmatpush.bf16.msra.mxu0 %v1819
        %1833 = vmatpush.bf16.msra.mxu0 %v1818
        %1834 = vmatpush.bf16.msra.mxu0 %v1817
        %1835 = vmatpush.bf16.msra.mxu0 %v1816
        %1836 = vmatpush.bf16.msra.mxu0 %v1815
        %1837 = vmatpush.bf16.msra.mxu0 %v1814
        %1838 = vmatmul.bf16.gmra.mxu0 %v1761
        %v1839 = vpop.f32.mrf.mxu0
        %v1840 = vadd.f32 %v1780, %v1839
        %v1841 = vpop.f32.mrf.mxu0
        %v1842 = vadd.f32 %v1780, %v1841
        %1843 = vdwg.mxu0
        %v1844 = vadd.f32 %v1588, %v1840
        %v1845 = vadd.f32 %v1589, %v1842
        %v1846 = vld [vmem:[%s15] sm:$0x1]
        %v1847 = vld [vmem:[%s16] sm:$0x1]
        %1848 = vadd.xlane.f32.xlu0 %v1844
        %v1849 = vpop.xlane.xlu0 %1848
        %1850 = vadd.xlane.f32.xlu0 %v1845
        %v1851 = vpop.xlane.xlu0 %1850
        %v1852 = vmul.f32 %v1849, %v1543
        %v1853 = vmul.f32 %v1851, %v1543
        %v1854 = vsub.f32 %v1844, %v1852
        %v1855 = vsub.f32 %v1845, %v1853
        %v1856 = vmul.f32 %v1854, %v1854
        %v1857 = vmul.f32 %v1855, %v1855
        %1858 = vadd.xlane.f32.xlu0 %v1856
        %v1859 = vpop.xlane.xlu0 %1858
        %1860 = vadd.xlane.f32.xlu0 %v1857
        %v1861 = vpop.xlane.xlu0 %1860
        %v1862 = vmul.f32 %v1859, %v1543
        %v1863 = vmul.f32 %v1861, %v1543
        %v1864 = vadd.f32 %v1862, 1e-05
        %v1865 = vadd.f32 %v1863, 1e-05
        %v1866 = vrsqrt.pop %v1864
        %v1867 = vmul.f32 %v1866, %v1864
        %v1868 = vmul.f32 %v1867, %v1866
        %v1869 = vmul.f32 0.5, %v1868
        %v1870 = vsub.f32 1.5, %v1869
        %v1871 = vmul.f32 %v1866, %v1870
        %vm1872 = vweird.f32 %v1864
        %vm1873 = vweird.f32 %v1866
        %vm1874 = vmor %vm1872, %vm1873
        %v1875 = vsel %vm1874, %v1866, %v1871
        %v1876 = vrsqrt.pop %v1865
        %v1877 = vmul.f32 %v1876, %v1865
        %v1878 = vmul.f32 %v1877, %v1876
        %v1879 = vmul.f32 0.5, %v1878
        %v1880 = vsub.f32 1.5, %v1879
        %v1881 = vmul.f32 %v1876, %v1880
        %vm1882 = vweird.f32 %v1865
        %vm1883 = vweird.f32 %v1876
        %vm1884 = vmor %vm1882, %vm1883
        %v1885 = vsel %vm1884, %v1876, %v1881
        %v1886 = vmul.f32 %v1854, %v1875
        %v1887 = vmul.f32 %v1855, %v1885
        %v1889 = vperm.slane %v1846, 0
        %v1891 = vmul.f32 %v1886, %v1889
        %v1892 = vmul.f32 %v1887, %v1889
        %v1894 = vperm.slane %v1847, 0
        %v1896 = vadd.f32 %v1891, %v1894
        %v1897 = vadd.f32 %v1892, %v1894
        %1898 = vst [vmem:[%s667] sm:$0xff] %v1896
        %1899 = vst [vmem:[%s667 + $0x8] sm:$0xff] %v1897
        %s1900 = sand.u32 %s407, 1
        %s1901 = scalar_lea.sflag [#allocation4], %s1900
        %s1902 = sand.u32 %s407, 1
        %s1903 = smul.addr %s1902, 16
        %s1904 = scalar_lea.vmem [#allocation14], %s1903
        // Predicated region
        $region117: #{tpu_custom_call.1} parent=87 // pred_check
          %p1905 = pneg %p417
        $region118: #{tpu_custom_call.1} parent=87 // pred_check_branch
          %1907 = sbr.rel (%p1905) target = $region120
        $region119: #{tpu_custom_call.1} parent=87 // pred_region
          %s1908 = smul.u32 2, %s37
          %1910 = vsyncadd %s1901, 0
          %s1911 = smul.addr %s1908, 8
          %s1912 = scalar_lea.hbm %s17, %s1911
          %s1913 = sshll.u32 %s1904, 4
          %s1914 = int_to_ptr.vmem [resolvable:$true] %s1913
          %s1915 = sshll.u32 %s1912, 4
          %s1916 = int_to_ptr.hbm [resolvable:$true] %s1915
          %1921 = dma.vmem_to_hbm [thread:$0]  %s1914, 256, %s1916, %s1901, 128, 128, 8
        $region120: #{tpu_custom_call.1} parent=87 // pred_fallthru
          _
      $region88: #{tpu_custom_call.1} parent=5 // pred_fallthru
        _
      %p1922 = scmp.le.s32.totalorder 2, %s32
      // Predicated region
      $region121: #{tpu_custom_call.1} parent=5 // pred_check
        %p1923 = pneg %p1922
      $region122: #{tpu_custom_call.1} parent=5 // pred_check_branch
        %1925 = sbr.rel (%p1923) target = $region124
      $region123: #{tpu_custom_call.1} parent=5 // pred_region
        %s1926 = ssub.s32 %s32, 2
        // Predicated region
        $region125: #{tpu_custom_call.1} parent=123 // pred_check
          %p1927 = pneg %p423
        $region126: #{tpu_custom_call.1} parent=123 // pred_check_branch
          %1929 = sbr.rel (%p1927) target = $region128
        $region127: #{tpu_custom_call.1} parent=123 // pred_region
          %s1930 = sand.u32 %s408, 1
          %s1931 = scalar_lea.sflag [#allocation4], %s1930
          %s1932 = sand.u32 %s408, 1
          %s1933 = smul.addr %s1932, 16
          %s1934 = scalar_lea.vmem [#allocation14], %s1933
          %1936 = dma.done %s1931, 256
        $region128: #{tpu_custom_call.1} parent=123 // pred_fallthru
          _
      $region124: #{tpu_custom_call.1} parent=5 // pred_fallthru
        _
    $region6: #{tpu_custom_call.1} parent=1 // loop_footer
      %s36 = sadd.s32 1, %s32
    $region7: #{tpu_custom_call.1} parent=1 // loop_footer_branch
      %31 = sbr.rel target = $region3
    $region8: #{tpu_custom_call.1} parent=1 // loop_exit
      _
    %1937 = vsyncpa [#allocation3], 1
    %s1938 = scalar_lea.sflag [#allocation3], 1
    %1939 = vsyncpa %s1938, 1
    %1940 = vsyncpa [#allocation6], 1
    %1941 = vsyncpa [#allocation9], 1
    %1942 = vsyncpa [#allocation12], 1
    %1943 = vsyncpa [#allocation4], 1
    %s1944 = scalar_lea.sflag [#allocation4], 1
    %1945 = vsyncpa %s1944, 1

</llo_original>
